<compile_context>
chip_gen: v7x
topology: tpu7x:2x2x1
jax: 0.10.0
libtpu: 0.0.40
codegen_flags: <defaults>
</compile_context>

<pallas_src>
import functools
import math

import jax
import jax.numpy as jnp
from jax import lax
from jax.experimental import pallas as pl
from jax.experimental.pallas import tpu as pltpu

SCALE_FACTOR = 1.0
DROPOUT_P = 0.8


def sfdp_kernel(x1_ref, x2_ref, wt_ref, b_ref, v_ref, rand_ref, out_ref, *,
                scale, dropout_p):
    tile_q = x1_ref.shape[0]

    # Fused q/k projection: one matmul over the stacked [tile_q + N, K] operand.
    # (bf16 operands, f32 accumulation; bias added in f32.)
    xk = jnp.concatenate([x1_ref[...], x2_ref[...]], axis=0)
    proj = jnp.dot(xk, wt_ref[...],
                   preferred_element_type=jnp.float32) + b_ref[...]
    q = proj[:tile_q, :]     # [tile_q, out]
    k = proj[tile_q:, :]     # [N, out]  (recomputed per tile; k/v kept resident)

    # scores = q @ k^T without materializing the transpose.
    s = lax.dot_general(
        q.astype(jnp.bfloat16), k.astype(jnp.bfloat16),
        dimension_numbers=(((1,), (1,)), ((), ())),
        preferred_element_type=jnp.float32)
    if scale != 1.0:                       # static; skip the mul when scale==1
        s = s * scale

    # Numerically-stable softmax (f32) with the dropout keep-scale folded into
    # the EUP approx-reciprocal:  e / (denom * (1-p)).
    m = jnp.max(s, axis=-1, keepdims=True)
    e = jnp.exp(s - m)
    denom = jnp.sum(e, axis=-1, keepdims=True)
    inv = pl.reciprocal(denom * (1.0 - dropout_p), approx=True)

    # Inverted dropout: keep with prob (1-p); kept values already scaled by inv.
    keep = rand_ref[...] >= dropout_p
    dropped = jnp.where(keep, e * inv, 0.0)

    out_ref[...] = jnp.dot(dropped.astype(jnp.bfloat16), v_ref[...],
                           preferred_element_type=jnp.float32
                           ).astype(out_ref.dtype)


def sfdp_forward(x1, x2, w, b, v, rand, *, scale=SCALE_FACTOR,
                 dropout_p=DROPOUT_P, tile_q=128):
    N, K = x1.shape
    out_size = w.shape[0]
    assert N % tile_q == 0, "N must be a multiple of tile_q"

    # bf16 MXU operands (halves HBM->VMEM bytes; f32 accumulation in-kernel).
    x1b = x1.astype(jnp.bfloat16)
    x2b = x2.astype(jnp.bfloat16)
    wt = w.T.astype(jnp.bfloat16)                    # [K, out]
    vb = v.astype(jnp.bfloat16)                      # [N, out]
    b2 = b.reshape(1, out_size).astype(jnp.float32)  # broadcastable bias

    grid = (N // tile_q,)

    flops = (2 * (2 * N) * K * out_size          # fused q/k projection
             + 2 * N * N * out_size              # q @ k^T
             + 2 * N * N * out_size)             # probs @ v
    transcendentals = N * N                      # exp
    bytes_accessed = ((x1b.size + x2b.size + wt.size + vb.size) * 2
                      + (rand.size + b2.size) * 4
                      + N * out_size * 4)

    kernel = functools.partial(sfdp_kernel, scale=scale, dropout_p=dropout_p)

    return pl.pallas_call(
        kernel,
        out_shape=jax.ShapeDtypeStruct((N, out_size), jnp.float32),
        grid=grid,
        in_specs=[
            pl.BlockSpec((tile_q, K), lambda i: (i, 0)),    # x1 row tile
            pl.BlockSpec((N, K), lambda i: (0, 0)),         # x2 (k input) resident
            pl.BlockSpec((K, out_size), lambda i: (0, 0)),  # W^T resident
            pl.BlockSpec((1, out_size), lambda i: (0, 0)),  # bias resident
            pl.BlockSpec((N, out_size), lambda i: (0, 0)),  # v resident
            pl.BlockSpec((tile_q, N), lambda i: (i, 0)),    # dropout uniforms tile
        ],
        out_specs=pl.BlockSpec((tile_q, out_size), lambda i: (i, 0)),
        compiler_params=pltpu.CompilerParams(
            dimension_semantics=("parallel",),
            vmem_limit_bytes=32 * 1024 * 1024),
        cost_estimate=pl.CostEstimate(
            flops=flops,
            transcendentals=transcendentals,
            bytes_accessed=bytes_accessed),
    )(x1b, x2b, wt, b2, vb, rand)


if __name__ == "__main__":
    # Small, lane-dense shapes consistent with the module
    # (original: N=1024, input=128, output=256).
    N = 256
    INPUT_SIZE = 128
    OUTPUT_SIZE = 256
    TILE_Q = 128

    key = jax.random.PRNGKey(0)
    k_x1, k_x2, k_w, k_b, k_v, k_drop = jax.random.split(key, 6)

    x1 = jax.random.normal(k_x1, (N, INPUT_SIZE), dtype=jnp.float32)
    x2 = jax.random.normal(k_x2, (N, INPUT_SIZE), dtype=jnp.float32)

    # Deterministic Linear params (PyTorch Linear: weight [out, in], bias [out]).
    bound = 1.0 / math.sqrt(INPUT_SIZE)
    w = jax.random.uniform(k_w, (OUTPUT_SIZE, INPUT_SIZE), dtype=jnp.float32,
                           minval=-bound, maxval=bound)
    b = jax.random.uniform(k_b, (OUTPUT_SIZE,), dtype=jnp.float32,
                           minval=-bound, maxval=bound)

    # TODO(synk): `v` is undefined in the original module; synthesized here.
    v = jax.random.normal(k_v, (N, OUTPUT_SIZE), dtype=jnp.float32)

    # Dropout uniforms generated outside the kernel (portable across TPU and
    # interpret mode; pltpu.prng_* lacks a CPU/interpret lowering).
    rand = jax.random.uniform(k_drop, (N, N), dtype=jnp.float32)

    out = sfdp_forward(x1, x2, w, b, v, rand, tile_q=TILE_Q)
    jax.block_until_ready(out)

    assert out.shape == (N, OUTPUT_SIZE)
    assert bool(jnp.all(jnp.isfinite(out)))
    print("KERNEL_OK")
</pallas_src>

<mosaic_0001>
module attributes {stable_mosaic.version = 11 : i64} {
  func.func @sfdp_kernel(%arg0: i32, %arg1: memref<128x128xbf16, #tpu.memory_space<vmem>>, %arg2: memref<256x128xbf16, #tpu.memory_space<vmem>>, %arg3: memref<128x256xbf16, #tpu.memory_space<vmem>>, %arg4: memref<1x256xf32, #tpu.memory_space<vmem>>, %arg5: memref<256x256xbf16, #tpu.memory_space<vmem>>, %arg6: memref<128x256xf32, #tpu.memory_space<vmem>>, %arg7: memref<128x256xf32, #tpu.memory_space<vmem>>) attributes {dimension_semantics = [#tpu.dimension_semantics<parallel>], iteration_bounds = array<i64: 2>, scalar_prefetch = 0 : i64, scratch_operands = 0 : i64, tpu.core_type = #tpu.core_type<tc>, window_params = [{transform_indices = @transform_0, window_bounds = array<i64: 128, 128>}, {pipeline_mode = #tpu.pipeline_mode<synchronous>, transform_indices = @transform_1, window_bounds = array<i64: 256, 128>}, {pipeline_mode = #tpu.pipeline_mode<synchronous>, transform_indices = @transform_2, window_bounds = array<i64: 128, 256>}, {pipeline_mode = #tpu.pipeline_mode<synchronous>, transform_indices = @transform_3, window_bounds = array<i64: 1, 256>}, {pipeline_mode = #tpu.pipeline_mode<synchronous>, transform_indices = @transform_4, window_bounds = array<i64: 256, 256>}, {transform_indices = @transform_5, window_bounds = array<i64: 128, 256>}, {transform_indices = @transform_6, window_bounds = array<i64: 128, 256>}]} {
    %c0 = arith.constant 0 : index
    %c0_0 = arith.constant 0 : index
    %0 = vector.load %arg1[%c0, %c0_0] : memref<128x128xbf16, #tpu.memory_space<vmem>>, vector<128x128xbf16>
    %c0_1 = arith.constant 0 : index
    %c0_2 = arith.constant 0 : index
    %1 = vector.load %arg2[%c0_1, %c0_2] : memref<256x128xbf16, #tpu.memory_space<vmem>>, vector<256x128xbf16>
    %2 = tpu.concatenate %0, %1 in 0 : vector<128x128xbf16>, vector<256x128xbf16> -> vector<384x128xbf16>
    %c0_3 = arith.constant 0 : index
    %c0_4 = arith.constant 0 : index
    %3 = vector.load %arg3[%c0_3, %c0_4] : memref<128x256xbf16, #tpu.memory_space<vmem>>, vector<128x256xbf16>
    %cst = arith.constant dense<0.000000e+00> : vector<384x256xf32>
    %4 = tpu.matmul %2, %3, %cst {dimension_numbers = #tpu.dot_dimension_numbers<[1], [0], [0], [1], [0, 0, 1, 1], [], []>} : vector<384x128xbf16>, vector<128x256xbf16>, vector<384x256xf32> -> vector<384x256xf32>
    %c0_5 = arith.constant 0 : index
    %c0_6 = arith.constant 0 : index
    %5 = vector.load %arg4[%c0_5, %c0_6] : memref<1x256xf32, #tpu.memory_space<vmem>>, vector<1x256xf32>
    %6 = vector.broadcast %5 : vector<1x256xf32> to vector<384x256xf32>
    %7 = arith.addf %4, %6 : vector<384x256xf32>
    %8 = vector.extract_strided_slice %7 {offsets = [0, 0], sizes = [128, 256], strides = [1, 1]} : vector<384x256xf32> to vector<128x256xf32>
    %9 = vector.extract_strided_slice %7 {offsets = [128, 0], sizes = [256, 256], strides = [1, 1]} : vector<384x256xf32> to vector<256x256xf32>
    %10 = arith.truncf %8 : vector<128x256xf32> to vector<128x256xbf16>
    %11 = arith.truncf %9 : vector<256x256xf32> to vector<256x256xbf16>
    %cst_7 = arith.constant dense<0.000000e+00> : vector<128x256xf32>
    %12 = tpu.matmul %10, %11, %cst_7 {dimension_numbers = #tpu.dot_dimension_numbers<[1], [1], [0], [0], [0, 0, 1, 0], [], []>} : vector<128x256xbf16>, vector<256x256xbf16>, vector<128x256xf32> -> vector<128x256xf32>
    %cst_8 = arith.constant dense<0xFF800000> : vector<128xf32>
    %13 = vector.multi_reduction <maximumf>, %12, %cst_8 [1] : vector<128x256xf32> to vector<128xf32>
    %14 = vector.shape_cast %13 : vector<128xf32> to vector<128x1xf32>
    %15 = vector.broadcast %14 : vector<128x1xf32> to vector<128x256xf32>
    %16 = arith.subf %12, %15 : vector<128x256xf32>
    %17 = math.exp %16 : vector<128x256xf32>
    %cst_9 = arith.constant dense<0.000000e+00> : vector<128xf32>
    %18 = vector.multi_reduction <add>, %17, %cst_9 [1] : vector<128x256xf32> to vector<128xf32>
    %19 = vector.shape_cast %18 : vector<128xf32> to vector<128x1xf32>
    %cst_10 = arith.constant 2.000000e-01 : f32
    %20 = vector.broadcast %cst_10 : f32 to vector<128x1xf32>
    %21 = arith.mulf %19, %20 : vector<128x1xf32>
    %22 = tpu.reciprocal %21 {approx = true} : vector<128x1xf32> -> vector<128x1xf32>
    %c0_11 = arith.constant 0 : index
    %c0_12 = arith.constant 0 : index
    %23 = vector.load %arg6[%c0_11, %c0_12] : memref<128x256xf32, #tpu.memory_space<vmem>>, vector<128x256xf32>
    %cst_13 = arith.constant 8.000000e-01 : f32
    %24 = vector.broadcast %cst_13 : f32 to vector<128x256xf32>
    %25 = arith.cmpf oge, %23, %24 : vector<128x256xf32>
    %26 = vector.broadcast %22 : vector<128x1xf32> to vector<128x256xf32>
    %27 = arith.mulf %17, %26 : vector<128x256xf32>
    %cst_14 = arith.constant 0.000000e+00 : f32
    %28 = vector.broadcast %cst_14 : f32 to vector<128x256xf32>
    %29 = arith.select %25, %27, %28 : vector<128x256xi1>, vector<128x256xf32>
    %30 = arith.truncf %29 : vector<128x256xf32> to vector<128x256xbf16>
    %c0_15 = arith.constant 0 : index
    %c0_16 = arith.constant 0 : index
    %31 = vector.load %arg5[%c0_15, %c0_16] : memref<256x256xbf16, #tpu.memory_space<vmem>>, vector<256x256xbf16>
    %cst_17 = arith.constant dense<0.000000e+00> : vector<128x256xf32>
    %32 = tpu.matmul %30, %31, %cst_17 {dimension_numbers = #tpu.dot_dimension_numbers<[1], [0], [0], [1], [0, 0, 1, 1], [], []>} : vector<128x256xbf16>, vector<256x256xbf16>, vector<128x256xf32> -> vector<128x256xf32>
    %c0_18 = arith.constant 0 : index
    %c0_19 = arith.constant 0 : index
    %33 = vector.load %arg7[%c0_18, %c0_19] : memref<128x256xf32, #tpu.memory_space<vmem>>, vector<128x256xf32>
    tpu.vector_store %arg7[%c0_18, %c0_19], %32 {strides = array<i32>} : memref<128x256xf32, #tpu.memory_space<vmem>>, vector<128x256xf32>,
    return
  }
  func.func @transform_0(%arg0: i32) -> (i32, i32) {
    %c0_i32 = arith.constant 0 : i32
    %c0_i32_0 = arith.constant 0 : i32
    return %arg0, %c0_i32 : i32, i32
  }
  func.func @transform_1(%arg0: i32) -> (i32, i32) {
    %c0_i32 = arith.constant 0 : i32
    %c0_i32_0 = arith.constant 0 : i32
    %c0_i32_1 = arith.constant 0 : i32
    return %c0_i32, %c0_i32_0 : i32, i32
  }
  func.func @transform_2(%arg0: i32) -> (i32, i32) {
    %c0_i32 = arith.constant 0 : i32
    %c0_i32_0 = arith.constant 0 : i32
    %c0_i32_1 = arith.constant 0 : i32
    return %c0_i32, %c0_i32_0 : i32, i32
  }
  func.func @transform_3(%arg0: i32) -> (i32, i32) {
    %c0_i32 = arith.constant 0 : i32
    %c0_i32_0 = arith.constant 0 : i32
    %c0_i32_1 = arith.constant 0 : i32
    return %c0_i32, %c0_i32_0 : i32, i32
  }
  func.func @transform_4(%arg0: i32) -> (i32, i32) {
    %c0_i32 = arith.constant 0 : i32
    %c0_i32_0 = arith.constant 0 : i32
    %c0_i32_1 = arith.constant 0 : i32
    return %c0_i32, %c0_i32_0 : i32, i32
  }
  func.func @transform_5(%arg0: i32) -> (i32, i32) {
    %c0_i32 = arith.constant 0 : i32
    %c0_i32_0 = arith.constant 0 : i32
    return %arg0, %c0_i32 : i32, i32
  }
  func.func @transform_6(%arg0: i32) -> (i32, i32) {
    %c0_i32 = arith.constant 0 : i32
    %c0_i32_0 = arith.constant 0 : i32
    return %arg0, %c0_i32 : i32, i32
  }
}

</mosaic_0001>

<llo_original>
// kernel: tpu_custom_call.1
$region0: #{tpu_custom_call.1}
  #allocation0 [shape = 'u32[]', space=smem, size = 0x4, offset = 0x4, fixed_abs, tag = 'smem constant byte address 0x4 - core index']
  #allocation1 [shape = 'u32[144,128]{1,0:T(1,128)}', space=vmem, size = 0x12000, scoped, tag = 'internal scratch']
  %s0 = inlined_call_operand.hbm [shape: bf16[256,128], index: 0, kind: input, shape index: {}]
  %s1 = inlined_call_operand.hbm [shape: bf16[256,128], index: 1, kind: input, shape index: {}]
  %s2 = inlined_call_operand.hbm [shape: bf16[128,256], index: 2, kind: input, shape index: {}]
  %s3 = inlined_call_operand.vmem [shape: f32[1,256], index: 3, kind: input, shape index: {}]
  %s4 = inlined_call_operand.hbm [shape: bf16[256,256], index: 4, kind: input, shape index: {}]
  %s5 = inlined_call_operand.hbm [shape: f32[256,256], index: 5, kind: input, shape index: {}]
  %s6 = inlined_call_operand.hbm [shape: f32[256,256], index: 6, kind: output, shape index: {}]
  %s7 = sld [smem:[#allocation0]]
  $region77: #{tpu_custom_call.1} parent=0
    _
  %s9 = ssub.s32 1, %s7
  %s10 = scalar_select 0, %s9, %s7
  $region1: #{tpu_custom_call.1} parent=0
    #allocation2 [shape = 'u8[65536]{0}', space=vmem, size = 0x10000, scoped, tag = 'input window, operand 0']
    #allocation3 [shape = 's32[2]{0}', space=sflag, size = 0x8, scoped, tag = 'scoped memory for tpu_custom_call.1']
    #allocation4 [shape = 's32[2]{0}', space=sflag, size = 0x8, scoped, tag = 'scoped memory for tpu_custom_call.1']
    #allocation5 [shape = 'u8[65536]{0}', space=vmem, size = 0x10000, scoped, tag = 'input window, operand 1, single buffered']
    #allocation6 [shape = 's32[1]{0}', space=sflag, size = 0x4, scoped, tag = 'scoped memory for tpu_custom_call.1']
    #allocation7 [shape = 'u8[65536]{0}', space=vmem, size = 0x10000, scoped, tag = 'input window, operand 2, single buffered']
    #allocation8 [shape = 'u8[131072]{0}', space=vmem, size = 0x20000, scoped, tag = 'input window, operand 4, single buffered']
    #allocation9 [shape = 's32[1]{0}', space=sflag, size = 0x4, scoped, tag = 'scoped memory for tpu_custom_call.1']
    #allocation10 [shape = 'u8[262144]{0}', space=vmem, size = 0x40000, scoped, tag = 'input window, operand 5']
    #allocation11 [shape = 'u8[262144]{0}', space=vmem, size = 0x40000, scoped, tag = 'output window, operand 0']
    %11 = vsyncpa [#allocation3], 0
    %s12 = scalar_lea.sflag [#allocation3], 1
    %13 = vsyncpa %s12, 0
    %14 = vsyncpa [#allocation6], 0
    %15 = vsyncpa [#allocation9], 0
    %16 = vsyncpa [#allocation4], 0
    %s17 = scalar_lea.sflag [#allocation4], 1
    %18 = vsyncpa %s17, 0
    loop: start=0, step=1, limit=4
    $region2: #{tpu_custom_call.1} parent=1 // loop_pre_header
      _
    $region3: #{tpu_custom_call.1} parent=1 // loop_header
      %s20 = sphi 0, %s24
      %p21 = scmp.ge.s32.totalorder %s20, 4
      %s30 = sphi 0, %s32
      %s33 = sphi 0, %s30
      %s34 = sphi 0, %s33
      %s50 = sphi 0, %s34
      %s54 = sphi 0, %s54
      %s56 = sphi 0, %s54
      %s57 = sphi 0, %s56
      %s71 = sphi 0, %s57
      %s75 = sphi 0, %s75
      %s77 = sphi 0, %s75
      %s78 = sphi 0, %s77
      %s92 = sphi 0, %s78
      %s96 = sphi 0, %s96
      %s98 = sphi 0, %s96
      %s99 = sphi 0, %s98
      %s113 = sphi 0, %s99
      %s117 = sphi 0, %s117
      %s119 = sphi 0, %s117
      %s120 = sphi 0, %s119
      %s134 = sphi 0, %s120
      %s140 = sphi 0, %s142
      %s143 = sphi 0, %s140
      %s144 = sphi 0, %s143
      %s160 = sphi 0, %s144
      %s166 = sphi 0, %s168
      %s169 = sphi 0, %s166
      %s170 = sphi 0, %s169
      %s186 = sphi 0, %s170
    $region4: #{tpu_custom_call.1} parent=1 // loop_header_branch
      %23 = sbr.rel (%p21) target = $region8
    $region5: #{tpu_custom_call.1} parent=1 // loop_body
      %s25 = ssub.s32 %s20, 1
      %s26 = ssub.s32 %s20, 2
      %s27 = sadd.s32 %s20, 1
      %s28 = ssub.s32 %s20, %s27
      %p29 = scmp.eq.s32.totalorder %s28, 0
      %s31 = sadd.s32 %s30, 1
      %s32 = scalar_select %p29, %s30, %s31
      %p35 = pneg %p29
      %p36 = scmp.eq.s32.totalorder %s20, 1
      %p37 = por %p35, %p36
      %p38 = scmp.ne.s32.totalorder %s30, %s33
      %p39 = scmp.eq.s32.totalorder %s20, 0
      %p40 = por %p38, %p39
      %p41 = scmp.ne.s32.totalorder %s30, %s33
      %p42 = scmp.eq.s32.totalorder %s25, 1
      %p43 = por %p41, %p42
      %p44 = scmp.ne.s32.totalorder %s33, %s34
      %p45 = scmp.eq.s32.totalorder %s25, 0
      %p46 = por %p44, %p45
      %p47 = scmp.ne.s32.totalorder %s33, %s34
      %p48 = scmp.eq.s32.totalorder %s26, 1
      %p49 = por %p47, %p48
      %p51 = scmp.ne.s32.totalorder %s34, %s50
      %p52 = scmp.eq.s32.totalorder %s26, 0
      %p53 = por %p51, %p52
      %s55 = sadd.s32 %s54, 1
      %p58 = scmp.eq.s32.totalorder %s20, 1
      %p59 = scmp.ne.s32.totalorder %s54, %s56
      %p60 = scmp.eq.s32.totalorder %s20, 0
      %p61 = por %p59, %p60
      %p62 = scmp.ne.s32.totalorder %s54, %s56
      %p63 = scmp.eq.s32.totalorder %s25, 1
      %p64 = por %p62, %p63
      %p65 = scmp.ne.s32.totalorder %s56, %s57
      %p66 = scmp.eq.s32.totalorder %s25, 0
      %p67 = por %p65, %p66
      %p68 = scmp.ne.s32.totalorder %s56, %s57
      %p69 = scmp.eq.s32.totalorder %s26, 1
      %p70 = por %p68, %p69
      %p72 = scmp.ne.s32.totalorder %s57, %s71
      %p73 = scmp.eq.s32.totalorder %s26, 0
      %p74 = por %p72, %p73
      %s76 = sadd.s32 %s75, 1
      %p79 = scmp.eq.s32.totalorder %s20, 1
      %p80 = scmp.ne.s32.totalorder %s75, %s77
      %p81 = scmp.eq.s32.totalorder %s20, 0
      %p82 = por %p80, %p81
      %p83 = scmp.ne.s32.totalorder %s75, %s77
      %p84 = scmp.eq.s32.totalorder %s25, 1
      %p85 = por %p83, %p84
      %p86 = scmp.ne.s32.totalorder %s77, %s78
      %p87 = scmp.eq.s32.totalorder %s25, 0
      %p88 = por %p86, %p87
      %p89 = scmp.ne.s32.totalorder %s77, %s78
      %p90 = scmp.eq.s32.totalorder %s26, 1
      %p91 = por %p89, %p90
      %p93 = scmp.ne.s32.totalorder %s78, %s92
      %p94 = scmp.eq.s32.totalorder %s26, 0
      %p95 = por %p93, %p94
      %s97 = sadd.s32 %s96, 1
      %p100 = scmp.eq.s32.totalorder %s20, 1
      %p101 = scmp.ne.s32.totalorder %s96, %s98
      %p102 = scmp.eq.s32.totalorder %s20, 0
      %p103 = por %p101, %p102
      %p104 = scmp.ne.s32.totalorder %s96, %s98
      %p105 = scmp.eq.s32.totalorder %s25, 1
      %p106 = por %p104, %p105
      %p107 = scmp.ne.s32.totalorder %s98, %s99
      %p108 = scmp.eq.s32.totalorder %s25, 0
      %p109 = por %p107, %p108
      %p110 = scmp.ne.s32.totalorder %s98, %s99
      %p111 = scmp.eq.s32.totalorder %s26, 1
      %p112 = por %p110, %p111
      %p114 = scmp.ne.s32.totalorder %s99, %s113
      %p115 = scmp.eq.s32.totalorder %s26, 0
      %p116 = por %p114, %p115
      %s118 = sadd.s32 %s117, 1
      %p121 = scmp.eq.s32.totalorder %s20, 1
      %p122 = scmp.ne.s32.totalorder %s117, %s119
      %p123 = scmp.eq.s32.totalorder %s20, 0
      %p124 = por %p122, %p123
      %p125 = scmp.ne.s32.totalorder %s117, %s119
      %p126 = scmp.eq.s32.totalorder %s25, 1
      %p127 = por %p125, %p126
      %p128 = scmp.ne.s32.totalorder %s119, %s120
      %p129 = scmp.eq.s32.totalorder %s25, 0
      %p130 = por %p128, %p129
      %p131 = scmp.ne.s32.totalorder %s119, %s120
      %p132 = scmp.eq.s32.totalorder %s26, 1
      %p133 = por %p131, %p132
      %p135 = scmp.ne.s32.totalorder %s120, %s134
      %p136 = scmp.eq.s32.totalorder %s26, 0
      %p137 = por %p135, %p136
      %s138 = ssub.s32 %s20, %s27
      %p139 = scmp.eq.s32.totalorder %s138, 0
      %s141 = sadd.s32 %s140, 1
      %s142 = scalar_select %p139, %s140, %s141
      %p145 = pneg %p139
      %p146 = scmp.eq.s32.totalorder %s20, 1
      %p147 = por %p145, %p146
      %p148 = scmp.ne.s32.totalorder %s140, %s143
      %p149 = scmp.eq.s32.totalorder %s20, 0
      %p150 = por %p148, %p149
      %p151 = scmp.ne.s32.totalorder %s140, %s143
      %p152 = scmp.eq.s32.totalorder %s25, 1
      %p153 = por %p151, %p152
      %p154 = scmp.ne.s32.totalorder %s143, %s144
      %p155 = scmp.eq.s32.totalorder %s25, 0
      %p156 = por %p154, %p155
      %p157 = scmp.ne.s32.totalorder %s143, %s144
      %p158 = scmp.eq.s32.totalorder %s26, 1
      %p159 = por %p157, %p158
      %p161 = scmp.ne.s32.totalorder %s144, %s160
      %p162 = scmp.eq.s32.totalorder %s26, 0
      %p163 = por %p161, %p162
      %s164 = ssub.s32 %s20, %s27
      %p165 = scmp.eq.s32.totalorder %s164, 0
      %s167 = sadd.s32 %s166, 1
      %s168 = scalar_select %p165, %s166, %s167
      %p171 = pneg %p165
      %p172 = scmp.eq.s32.totalorder %s20, 1
      %p173 = por %p171, %p172
      %p174 = scmp.ne.s32.totalorder %s166, %s169
      %p175 = scmp.eq.s32.totalorder %s20, 0
      %p176 = por %p174, %p175
      %p177 = scmp.ne.s32.totalorder %s166, %s169
      %p178 = scmp.eq.s32.totalorder %s25, 1
      %p179 = por %p177, %p178
      %p180 = scmp.ne.s32.totalorder %s169, %s170
      %p181 = scmp.eq.s32.totalorder %s25, 0
      %p182 = por %p180, %p181
      %p183 = scmp.ne.s32.totalorder %s169, %s170
      %p184 = scmp.eq.s32.totalorder %s26, 1
      %p185 = por %p183, %p184
      %p187 = scmp.ne.s32.totalorder %s170, %s186
      %p188 = scmp.eq.s32.totalorder %s26, 0
      %p189 = por %p187, %p188
      %p190 = scmp.le.s32.totalorder 1, %s20
      %p191 = scmp.lt.s32.totalorder %s20, 3
      %p192 = pnand %p190, %p191
      %p193 = pneg %p192
      // Predicated region
      $region9: #{tpu_custom_call.1} parent=5 // pred_check
        _
      $region10: #{tpu_custom_call.1} parent=5 // pred_check_branch
        %195 = sbr.rel (%p192) target = $region12
      $region11: #{tpu_custom_call.1} parent=5 // pred_region
        %s196 = ssub.s32 %s20, 1
        // Predicated region
        $region13: #{tpu_custom_call.1} parent=11 // pred_check
          %p197 = pneg %p67
        $region14: #{tpu_custom_call.1} parent=11 // pred_check_branch
          %199 = sbr.rel (%p197) target = $region16
        $region15: #{tpu_custom_call.1} parent=11 // pred_region
          %s201 = ssub.s32 2048, 2048
          %202 = vsyncadd [#allocation6], %s201
          %s203 = sshll.u32 [#allocation5], 4
          %s204 = int_to_ptr.vmem [resolvable:$true] %s203
          %209 = dma.hbm_to_vmem [thread:$0]  %s1, 2048, %s204, [#allocation6], 64, 64, 4
        $region16: #{tpu_custom_call.1} parent=11 // pred_fallthru
          _
        // Predicated region
        $region17: #{tpu_custom_call.1} parent=11 // pred_check
          %p210 = pneg %p88
        $region18: #{tpu_custom_call.1} parent=11 // pred_check_branch
          %212 = sbr.rel (%p210) target = $region20
        $region19: #{tpu_custom_call.1} parent=11 // pred_region
          %s214 = ssub.s32 2048, 2048
          %215 = vsyncadd [#allocation6], %s214
          %s216 = sshll.u32 [#allocation7], 4
          %s217 = int_to_ptr.vmem [resolvable:$true] %s216
          %222 = dma.hbm_to_vmem [thread:$0]  %s2, 2048, %s217, [#allocation6], 128, 128, 8
        $region20: #{tpu_custom_call.1} parent=11 // pred_fallthru
          _
        // Predicated region
        $region21: #{tpu_custom_call.1} parent=11 // pred_check
          %p223 = pneg %p109
        $region22: #{tpu_custom_call.1} parent=11 // pred_check_branch
          %225 = sbr.rel (%p223) target = $region24
        $region23: #{tpu_custom_call.1} parent=11 // pred_region
          _
        $region24: #{tpu_custom_call.1} parent=11 // pred_fallthru
          _
        // Predicated region
        $region25: #{tpu_custom_call.1} parent=11 // pred_check
          %p226 = pneg %p130
        $region26: #{tpu_custom_call.1} parent=11 // pred_check_branch
          %228 = sbr.rel (%p226) target = $region28
        $region27: #{tpu_custom_call.1} parent=11 // pred_region
          %s230 = ssub.s32 4096, 4096
          %231 = vsyncadd [#allocation9], %s230
          %s232 = sshll.u32 [#allocation8], 4
          %s233 = int_to_ptr.vmem [resolvable:$true] %s232
          %238 = dma.hbm_to_vmem [thread:$0]  %s4, 4096, %s233, [#allocation9], 128, 128, 8
        $region28: #{tpu_custom_call.1} parent=11 // pred_fallthru
          _
      $region12: #{tpu_custom_call.1} parent=5 // pred_fallthru
        _
      %p239 = scmp.lt.s32.totalorder %s20, 2
      // Predicated region
      $region29: #{tpu_custom_call.1} parent=5 // pred_check
        %p240 = pneg %p239
      $region30: #{tpu_custom_call.1} parent=5 // pred_check_branch
        %242 = sbr.rel (%p240) target = $region32
      $region31: #{tpu_custom_call.1} parent=5 // pred_region
        // Predicated region
        $region33: #{tpu_custom_call.1} parent=31 // pred_check
          %p243 = pneg %p40
        $region34: #{tpu_custom_call.1} parent=31 // pred_check_branch
          %245 = sbr.rel (%p243) target = $region36
        $region35: #{tpu_custom_call.1} parent=31 // pred_region
          %s246 = sand.u32 %s20, 1
          %s247 = scalar_lea.sflag [#allocation3], %s246
          %s248 = sand.u32 %s30, 1
          %s249 = smul.addr %s248, 64
          %s250 = scalar_lea.vmem [#allocation2], %s249
          %s251 = smul.u32 16, %s20
          %s253 = ssub.s32 1024, 1024
          %254 = vsyncadd %s247, %s253
          %s255 = smul.addr %s251, 64
          %s256 = scalar_lea.hbm %s0, %s255
          %s257 = sshll.u32 %s250, 4
          %s258 = int_to_ptr.vmem [resolvable:$true] %s257
          %263 = dma.hbm_to_vmem [thread:$0]  %s256, 1024, %s258, %s247, 64, 64, 4
        $region36: #{tpu_custom_call.1} parent=31 // pred_fallthru
          _
        // Predicated region
        $region37: #{tpu_custom_call.1} parent=31 // pred_check
          %p264 = pneg %p150
        $region38: #{tpu_custom_call.1} parent=31 // pred_check_branch
          %266 = sbr.rel (%p264) target = $region40
        $region39: #{tpu_custom_call.1} parent=31 // pred_region
          %s267 = sand.u32 %s20, 1
          %s268 = scalar_lea.sflag [#allocation3], %s267
          %s269 = sand.u32 %s140, 1
          %s270 = smul.addr %s269, 256
          %s271 = scalar_lea.vmem [#allocation10], %s270
          %s272 = smul.u32 16, %s20
          %s274 = ssub.s32 4096, 4096
          %275 = vsyncadd %s268, %s274
          %s276 = smul.addr %s272, 2
          %s277 = smul.addr %s276, 128
          %s278 = scalar_lea.hbm %s5, %s277
          %s279 = sshll.u32 %s271, 4
          %s280 = int_to_ptr.vmem [resolvable:$true] %s279
          %285 = dma.hbm_to_vmem [thread:$0]  %s278, 4096, %s280, %s268, 256, 256, 16
        $region40: #{tpu_custom_call.1} parent=31 // pred_fallthru
          _
      $region32: #{tpu_custom_call.1} parent=5 // pred_fallthru
        _
      %p286 = scmp.le.s32.totalorder 1, %s20
      %p287 = scmp.lt.s32.totalorder %s20, 3
      %p288 = pnand %p286, %p287
      %p289 = pneg %p288
      // Predicated region
      $region41: #{tpu_custom_call.1} parent=5 // pred_check
        _
      $region42: #{tpu_custom_call.1} parent=5 // pred_check_branch
        %291 = sbr.rel (%p288) target = $region44
      $region43: #{tpu_custom_call.1} parent=5 // pred_region
        %s292 = ssub.s32 %s20, 1
        %s293 = sand.u32 %s25, 1
        %s294 = scalar_lea.sflag [#allocation3], %s293
        %s295 = sand.u32 %s33, 1
        %s296 = smul.addr %s295, 64
        %s297 = scalar_lea.vmem [#allocation2], %s296
        // Predicated region
        $region45: #{tpu_custom_call.1} parent=43 // pred_check
          %p298 = pneg %p46
        $region46: #{tpu_custom_call.1} parent=43 // pred_check_branch
          %300 = sbr.rel (%p298) target = $region48
        $region47: #{tpu_custom_call.1} parent=43 // pred_region
          %301 = dma.done %s294, 1024
        $region48: #{tpu_custom_call.1} parent=43 // pred_fallthru
          _
        // Predicated region
        $region49: #{tpu_custom_call.1} parent=43 // pred_check
          %p302 = pneg %p67
        $region50: #{tpu_custom_call.1} parent=43 // pred_check_branch
          %304 = sbr.rel (%p302) target = $region52
        $region51: #{tpu_custom_call.1} parent=43 // pred_region
          %305 = dma.done [#allocation6], 2048
        $region52: #{tpu_custom_call.1} parent=43 // pred_fallthru
          _
        // Predicated region
        $region53: #{tpu_custom_call.1} parent=43 // pred_check
          %p306 = pneg %p88
        $region54: #{tpu_custom_call.1} parent=43 // pred_check_branch
          %308 = sbr.rel (%p306) target = $region56
        $region55: #{tpu_custom_call.1} parent=43 // pred_region
          %309 = dma.done [#allocation6], 2048
        $region56: #{tpu_custom_call.1} parent=43 // pred_fallthru
          _
        // Predicated region
        $region57: #{tpu_custom_call.1} parent=43 // pred_check
          %p310 = pneg %p130
        $region58: #{tpu_custom_call.1} parent=43 // pred_check_branch
          %312 = sbr.rel (%p310) target = $region60
        $region59: #{tpu_custom_call.1} parent=43 // pred_region
          %313 = dma.done [#allocation9], 4096
        $region60: #{tpu_custom_call.1} parent=43 // pred_fallthru
          _
        %s314 = sand.u32 %s25, 1
        %s315 = scalar_lea.sflag [#allocation3], %s314
        %s316 = sand.u32 %s143, 1
        %s317 = smul.addr %s316, 256
        %s318 = scalar_lea.vmem [#allocation10], %s317
        // Predicated region
        $region61: #{tpu_custom_call.1} parent=43 // pred_check
          %p319 = pneg %p156
        $region62: #{tpu_custom_call.1} parent=43 // pred_check_branch
          %321 = sbr.rel (%p319) target = $region64
        $region63: #{tpu_custom_call.1} parent=43 // pred_region
          %322 = dma.done %s315, 4096
        $region64: #{tpu_custom_call.1} parent=43 // pred_fallthru
          _
        %s323 = sand.u32 %s25, 1
        %s324 = scalar_lea.sflag [#allocation3], %s323
        %s325 = sand.u32 %s33, 1
        %s326 = smul.addr %s325, 64
        %s327 = scalar_lea.vmem [#allocation2], %s326
        %p328 = pneg %p46
        %p329 = pneg %p43
        %p330 = pneg %p67
        %p331 = pneg %p64
        %p332 = pneg %p88
        %p333 = pneg %p85
        %p334 = pneg %p109
        %p335 = pneg %p106
        %p336 = pneg %p130
        %p337 = pneg %p127
        %s338 = sand.u32 %s25, 1
        %s339 = scalar_lea.sflag [#allocation3], %s338
        %s340 = sand.u32 %s143, 1
        %s341 = smul.addr %s340, 256
        %s342 = scalar_lea.vmem [#allocation10], %s341
        %p343 = pneg %p156
        %p344 = pneg %p153
        %p345 = pneg %p182
        %p346 = pneg %p179
        %s347 = sand.u32 %s169, 1
        %s348 = scalar_lea.sflag [#allocation4], %s347
        %s349 = sand.u32 %s169, 1
        %s350 = smul.addr %s349, 256
        %s351 = scalar_lea.vmem [#allocation11], %s350
        %s352 = smul.u32 16, %s25
        %s353 = smul.u32 16, %s25
        %s354 = smul.u32 16, %s25
        %v356 = vld [vmem:[%s297] sm:$0xf]
        %v357 = vld [vmem:[%s297 + $0x4] sm:$0xf]
        %v358 = vld [vmem:[%s297 + $0x8] sm:$0xf]
        %v359 = vld [vmem:[%s297 + $0xc] sm:$0xf]
        %v360 = vld [vmem:[%s297 + $0x10] sm:$0xf]
        %v361 = vld [vmem:[%s297 + $0x14] sm:$0xf]
        %v362 = vld [vmem:[%s297 + $0x18] sm:$0xf]
        %v363 = vld [vmem:[%s297 + $0x1c] sm:$0xf]
        %v364 = vld [vmem:[%s297 + $0x20] sm:$0xf]
        %v365 = vld [vmem:[%s297 + $0x24] sm:$0xf]
        %v366 = vld [vmem:[%s297 + $0x28] sm:$0xf]
        %v367 = vld [vmem:[%s297 + $0x2c] sm:$0xf]
        %v368 = vld [vmem:[%s297 + $0x30] sm:$0xf]
        %v369 = vld [vmem:[%s297 + $0x34] sm:$0xf]
        %v370 = vld [vmem:[%s297 + $0x38] sm:$0xf]
        %v371 = vld [vmem:[%s297 + $0x3c] sm:$0xf]
        %v372 = vld [vmem:[#allocation5] sm:$0xf]
        %v373 = vld [vmem:[#allocation5 + $0x4] sm:$0xf]
        %v374 = vld [vmem:[#allocation5 + $0x8] sm:$0xf]
        %v375 = vld [vmem:[#allocation5 + $0xc] sm:$0xf]
        %v376 = vld [vmem:[#allocation5 + $0x10] sm:$0xf]
        %v377 = vld [vmem:[#allocation5 + $0x14] sm:$0xf]
        %v378 = vld [vmem:[#allocation5 + $0x18] sm:$0xf]
        %v379 = vld [vmem:[#allocation5 + $0x1c] sm:$0xf]
        %v380 = vld [vmem:[#allocation5 + $0x20] sm:$0xf]
        %v381 = vld [vmem:[#allocation5 + $0x24] sm:$0xf]
        %v382 = vld [vmem:[#allocation5 + $0x28] sm:$0xf]
        %v383 = vld [vmem:[#allocation5 + $0x2c] sm:$0xf]
        %v384 = vld [vmem:[#allocation5 + $0x30] sm:$0xf]
        %v385 = vld [vmem:[#allocation5 + $0x34] sm:$0xf]
        %v386 = vld [vmem:[#allocation5 + $0x38] sm:$0xf]
        %v387 = vld [vmem:[#allocation5 + $0x3c] sm:$0xf]
        %v388 = vld [vmem:[#allocation5 + $0x40] sm:$0xf]
        %v389 = vld [vmem:[#allocation5 + $0x44] sm:$0xf]
        %v390 = vld [vmem:[#allocation5 + $0x48] sm:$0xf]
        %v391 = vld [vmem:[#allocation5 + $0x4c] sm:$0xf]
        %v392 = vld [vmem:[#allocation5 + $0x50] sm:$0xf]
        %v393 = vld [vmem:[#allocation5 + $0x54] sm:$0xf]
        %v394 = vld [vmem:[#allocation5 + $0x58] sm:$0xf]
        %v395 = vld [vmem:[#allocation5 + $0x5c] sm:$0xf]
        %v396 = vld [vmem:[#allocation5 + $0x60] sm:$0xf]
        %v397 = vld [vmem:[#allocation5 + $0x64] sm:$0xf]
        %v398 = vld [vmem:[#allocation5 + $0x68] sm:$0xf]
        %v399 = vld [vmem:[#allocation5 + $0x6c] sm:$0xf]
        %v400 = vld [vmem:[#allocation5 + $0x70] sm:$0xf]
        %v401 = vld [vmem:[#allocation5 + $0x74] sm:$0xf]
        %v402 = vld [vmem:[#allocation5 + $0x78] sm:$0xf]
        %v403 = vld [vmem:[#allocation5 + $0x7c] sm:$0xf]
        %v420 = vunpack.c.l.b16 %v356
        %v421 = vunpack.c.l.b16 %v357
        %v422 = vunpack.c.l.b16 %v358
        %v423 = vunpack.c.l.b16 %v359
        %v424 = vunpack.c.l.b16 %v360
        %v425 = vunpack.c.l.b16 %v361
        %v426 = vunpack.c.l.b16 %v362
        %v427 = vunpack.c.l.b16 %v363
        %v428 = vunpack.c.l.b16 %v364
        %v429 = vunpack.c.l.b16 %v365
        %v430 = vunpack.c.l.b16 %v366
        %v431 = vunpack.c.l.b16 %v367
        %v432 = vunpack.c.l.b16 %v368
        %v433 = vunpack.c.l.b16 %v369
        %v434 = vunpack.c.l.b16 %v370
        %v435 = vunpack.c.l.b16 %v371
        %v436 = vpack.c.b16 %v421, %v420
        %v437 = vpack.c.b16 %v423, %v422
        %v438 = vpack.c.b16 %v425, %v424
        %v439 = vpack.c.b16 %v427, %v426
        %v440 = vpack.c.b16 %v429, %v428
        %v441 = vpack.c.b16 %v431, %v430
        %v442 = vpack.c.b16 %v433, %v432
        %v443 = vpack.c.b16 %v435, %v434
        %v484 = vunpack.c.l.b16 %v372
        %v485 = vunpack.c.l.b16 %v373
        %v486 = vunpack.c.l.b16 %v374
        %v487 = vunpack.c.l.b16 %v375
        %v488 = vunpack.c.l.b16 %v376
        %v489 = vunpack.c.l.b16 %v377
        %v490 = vunpack.c.l.b16 %v378
        %v491 = vunpack.c.l.b16 %v379
        %v492 = vunpack.c.l.b16 %v380
        %v493 = vunpack.c.l.b16 %v381
        %v494 = vunpack.c.l.b16 %v382
        %v495 = vunpack.c.l.b16 %v383
        %v496 = vunpack.c.l.b16 %v384
        %v497 = vunpack.c.l.b16 %v385
        %v498 = vunpack.c.l.b16 %v386
        %v499 = vunpack.c.l.b16 %v387
        %v500 = vunpack.c.l.b16 %v388
        %v501 = vunpack.c.l.b16 %v389
        %v502 = vunpack.c.l.b16 %v390
        %v503 = vunpack.c.l.b16 %v391
        %v504 = vunpack.c.l.b16 %v392
        %v505 = vunpack.c.l.b16 %v393
        %v506 = vunpack.c.l.b16 %v394
        %v507 = vunpack.c.l.b16 %v395
        %v508 = vunpack.c.l.b16 %v396
        %v509 = vunpack.c.l.b16 %v397
        %v510 = vunpack.c.l.b16 %v398
        %v511 = vunpack.c.l.b16 %v399
        %v512 = vunpack.c.l.b16 %v400
        %v513 = vunpack.c.l.b16 %v401
        %v514 = vunpack.c.l.b16 %v402
        %v515 = vunpack.c.l.b16 %v403
        %v516 = vpack.c.b16 %v485, %v484
        %v517 = vpack.c.b16 %v487, %v486
        %v518 = vpack.c.b16 %v489, %v488
        %v519 = vpack.c.b16 %v491, %v490
        %v520 = vpack.c.b16 %v493, %v492
        %v521 = vpack.c.b16 %v495, %v494
        %v522 = vpack.c.b16 %v497, %v496
        %v523 = vpack.c.b16 %v499, %v498
        %v524 = vpack.c.b16 %v501, %v500
        %v525 = vpack.c.b16 %v503, %v502
        %v526 = vpack.c.b16 %v505, %v504
        %v527 = vpack.c.b16 %v507, %v506
        %v528 = vpack.c.b16 %v509, %v508
        %v529 = vpack.c.b16 %v511, %v510
        %v530 = vpack.c.b16 %v513, %v512
        %v531 = vpack.c.b16 %v515, %v514
        %v548 = vld [vmem:[#allocation7] sm:$0xff]
        %v549 = vld [vmem:[#allocation7 + $0x8] sm:$0xff]
        %v550 = vld [vmem:[#allocation7 + $0x10] sm:$0xff]
        %v551 = vld [vmem:[#allocation7 + $0x18] sm:$0xff]
        %v552 = vld [vmem:[#allocation7 + $0x20] sm:$0xff]
        %v553 = vld [vmem:[#allocation7 + $0x28] sm:$0xff]
        %v554 = vld [vmem:[#allocation7 + $0x30] sm:$0xff]
        %v555 = vld [vmem:[#allocation7 + $0x38] sm:$0xff]
        %v556 = vld [vmem:[#allocation7 + $0x40] sm:$0xff]
        %v557 = vld [vmem:[#allocation7 + $0x48] sm:$0xff]
        %v558 = vld [vmem:[#allocation7 + $0x50] sm:$0xff]
        %v559 = vld [vmem:[#allocation7 + $0x58] sm:$0xff]
        %v560 = vld [vmem:[#allocation7 + $0x60] sm:$0xff]
        %v561 = vld [vmem:[#allocation7 + $0x68] sm:$0xff]
        %v562 = vld [vmem:[#allocation7 + $0x70] sm:$0xff]
        %v563 = vld [vmem:[#allocation7 + $0x78] sm:$0xff]
        %v564 = vld [vmem:[%s3] sm:$0x3]
        %v566 = vlaneseq
        %v567 = vshrl.u32 %v566, 7
        %v568 = vsub.s32 0, %v567
        %v569 = vrot.slane %v564, %v568
        %v570 = vlaneseq
        %v571 = vshrl.u32 %v570, 7
        %v572 = vsub.s32 1, %v571
        %v573 = vrot.slane %v564, %v572
        %v592 = vunpack.c.l.b16 %v548
        %v593 = vunpack.c.h.b16 %v548
        %v594 = vunpack.c.l.b16 %v549
        %v595 = vunpack.c.h.b16 %v549
        %v596 = vunpack.c.l.b16 %v550
        %v597 = vunpack.c.h.b16 %v550
        %v598 = vunpack.c.l.b16 %v551
        %v599 = vunpack.c.h.b16 %v551
        %v600 = vunpack.c.l.b16 %v552
        %v601 = vunpack.c.h.b16 %v552
        %v602 = vunpack.c.l.b16 %v553
        %v603 = vunpack.c.h.b16 %v553
        %v604 = vunpack.c.l.b16 %v554
        %v605 = vunpack.c.h.b16 %v554
        %v606 = vunpack.c.l.b16 %v555
        %v607 = vunpack.c.h.b16 %v555
        %v608 = vunpack.c.l.b16 %v556
        %v609 = vunpack.c.h.b16 %v556
        %v610 = vunpack.c.l.b16 %v557
        %v611 = vunpack.c.h.b16 %v557
        %v612 = vunpack.c.l.b16 %v558
        %v613 = vunpack.c.h.b16 %v558
        %v614 = vunpack.c.l.b16 %v559
        %v615 = vunpack.c.h.b16 %v559
        %v616 = vunpack.c.l.b16 %v560
        %v617 = vunpack.c.h.b16 %v560
        %v618 = vunpack.c.l.b16 %v561
        %v619 = vunpack.c.h.b16 %v561
        %v620 = vunpack.c.l.b16 %v562
        %v621 = vunpack.c.h.b16 %v562
        %v622 = vunpack.c.l.b16 %v563
        %v623 = vunpack.c.h.b16 %v563
        %v624 = vpack.c.b16 %v594, %v592
        %v625 = vpack.c.b16 %v595, %v593
        %v626 = vpack.c.b16 %v598, %v596
        %v627 = vpack.c.b16 %v599, %v597
        %v628 = vpack.c.b16 %v602, %v600
        %v629 = vpack.c.b16 %v603, %v601
        %v630 = vpack.c.b16 %v606, %v604
        %v631 = vpack.c.b16 %v607, %v605
        %v632 = vpack.c.b16 %v610, %v608
        %v633 = vpack.c.b16 %v611, %v609
        %v634 = vpack.c.b16 %v614, %v612
        %v635 = vpack.c.b16 %v615, %v613
        %v636 = vpack.c.b16 %v618, %v616
        %v637 = vpack.c.b16 %v619, %v617
        %v638 = vpack.c.b16 %v622, %v620
        %v639 = vpack.c.b16 %v623, %v621
        %656 = vmatprep.subr.bf16.mxu0 %v625
        %657 = vmatpush1.bf16.msra.mxu0 %v624
        %658 = vmatprep.subr.bf16.mxu0 %v627
        %659 = vmatpush1.bf16.msra.mxu0 %v626
        %660 = vmatprep.subr.bf16.mxu0 %v629
        %661 = vmatpush1.bf16.msra.mxu0 %v628
        %662 = vmatprep.subr.bf16.mxu0 %v631
        %663 = vmatpush1.bf16.msra.mxu0 %v630
        %664 = vmatprep.subr.bf16.mxu0 %v633
        %665 = vmatpush1.bf16.msra.mxu0 %v632
        %666 = vmatprep.subr.bf16.mxu0 %v635
        %667 = vmatpush1.bf16.msra.mxu0 %v634
        %668 = vmatprep.subr.bf16.mxu0 %v637
        %669 = vmatpush1.bf16.msra.mxu0 %v636
        %670 = vmatprep.subr.bf16.mxu0 %v639
        %671 = vmatpush1.bf16.msra.mxu0 %v638
        %672 = vmatprep.subr.bf16.mxu0 0
        %673 = vmatpush1.bf16.msra.mxu0 0
        %674 = vmatprep.subr.bf16.mxu0 0
        %675 = vmatpush1.bf16.msra.mxu0 0
        %676 = vmatprep.subr.bf16.mxu0 0
        %677 = vmatpush1.bf16.msra.mxu0 0
        %678 = vmatprep.subr.bf16.mxu0 0
        %679 = vmatpush1.bf16.msra.mxu0 0
        %680 = vmatprep.subr.bf16.mxu0 0
        %681 = vmatpush1.bf16.msra.mxu0 0
        %682 = vmatprep.subr.bf16.mxu0 0
        %683 = vmatpush1.bf16.msra.mxu0 0
        %684 = vmatprep.subr.bf16.mxu0 0
        %685 = vmatpush1.bf16.msra.mxu0 0
        %686 = vmatprep.subr.bf16.mxu0 0
        %687 = vmatpush1.bf16.msra.mxu0 0
        %688 = vmatprep.mubr.bf16.mxu0 0
        %689 = vmatmul.mubr.bf16.gmra.mrb[0].mxu0 %v436
        %v690 = vpop.f32.mrb[0].mxu0
        %v691 = vadd.f32 %v569, %v690
        %v692 = vpop.f32.mrb[0].mxu0
        %v693 = vadd.f32 %v573, %v692
        %v694 = vpop.f32.mrb[0].mxu0
        %v695 = vadd.f32 %v569, %v694
        %v696 = vpop.f32.mrb[0].mxu0
        %v697 = vadd.f32 %v573, %v696
        %698 = vmatprep.mubr.bf16.mxu0 0
        %699 = vmatmul.mubr.bf16.gmra.mrb[0].mxu0 %v437
        %v700 = vpop.f32.mrb[0].mxu0
        %v701 = vadd.f32 %v569, %v700
        %v702 = vpop.f32.mrb[0].mxu0
        %v703 = vadd.f32 %v573, %v702
        %v704 = vpop.f32.mrb[0].mxu0
        %v705 = vadd.f32 %v569, %v704
        %v706 = vpop.f32.mrb[0].mxu0
        %v707 = vadd.f32 %v573, %v706
        %708 = vmatprep.mubr.bf16.mxu0 0
        %709 = vmatmul.mubr.bf16.gmra.mrb[0].mxu0 %v438
        %v710 = vpop.f32.mrb[0].mxu0
        %v711 = vadd.f32 %v569, %v710
        %v712 = vpop.f32.mrb[0].mxu0
        %v713 = vadd.f32 %v573, %v712
        %v714 = vpop.f32.mrb[0].mxu0
        %v715 = vadd.f32 %v569, %v714
        %v716 = vpop.f32.mrb[0].mxu0
        %v717 = vadd.f32 %v573, %v716
        %718 = vmatprep.mubr.bf16.mxu0 0
        %719 = vmatmul.mubr.bf16.gmra.mrb[0].mxu0 %v439
        %v720 = vpop.f32.mrb[0].mxu0
        %v721 = vadd.f32 %v569, %v720
        %v722 = vpop.f32.mrb[0].mxu0
        %v723 = vadd.f32 %v573, %v722
        %v724 = vpop.f32.mrb[0].mxu0
        %v725 = vadd.f32 %v569, %v724
        %v726 = vpop.f32.mrb[0].mxu0
        %v727 = vadd.f32 %v573, %v726
        %728 = vmatprep.mubr.bf16.mxu0 0
        %729 = vmatmul.mubr.bf16.gmra.mrb[0].mxu0 %v440
        %v730 = vpop.f32.mrb[0].mxu0
        %v731 = vadd.f32 %v569, %v730
        %v732 = vpop.f32.mrb[0].mxu0
        %v733 = vadd.f32 %v573, %v732
        %v734 = vpop.f32.mrb[0].mxu0
        %v735 = vadd.f32 %v569, %v734
        %v736 = vpop.f32.mrb[0].mxu0
        %v737 = vadd.f32 %v573, %v736
        %738 = vmatprep.mubr.bf16.mxu0 0
        %739 = vmatmul.mubr.bf16.gmra.mrb[0].mxu0 %v441
        %v740 = vpop.f32.mrb[0].mxu0
        %v741 = vadd.f32 %v569, %v740
        %v742 = vpop.f32.mrb[0].mxu0
        %v743 = vadd.f32 %v573, %v742
        %v744 = vpop.f32.mrb[0].mxu0
        %v745 = vadd.f32 %v569, %v744
        %v746 = vpop.f32.mrb[0].mxu0
        %v747 = vadd.f32 %v573, %v746
        %748 = vmatprep.mubr.bf16.mxu0 0
        %749 = vmatmul.mubr.bf16.gmra.mrb[0].mxu0 %v442
        %v750 = vpop.f32.mrb[0].mxu0
        %v751 = vadd.f32 %v569, %v750
        %v752 = vpop.f32.mrb[0].mxu0
        %v753 = vadd.f32 %v573, %v752
        %v754 = vpop.f32.mrb[0].mxu0
        %v755 = vadd.f32 %v569, %v754
        %v756 = vpop.f32.mrb[0].mxu0
        %v757 = vadd.f32 %v573, %v756
        %758 = vmatprep.mubr.bf16.mxu0 0
        %759 = vmatmul.mubr.bf16.gmra.mrb[0].mxu0 %v443
        %v760 = vpop.f32.mrb[0].mxu0
        %v761 = vadd.f32 %v569, %v760
        %v762 = vpop.f32.mrb[0].mxu0
        %v763 = vadd.f32 %v573, %v762
        %v764 = vpop.f32.mrb[0].mxu0
        %v765 = vadd.f32 %v569, %v764
        %v766 = vpop.f32.mrb[0].mxu0
        %v767 = vadd.f32 %v573, %v766
        %768 = vmatprep.mubr.bf16.mxu0 0
        %769 = vmatmul.mubr.bf16.gmra.mrb[0].mxu0 %v516
        %v770 = vpop.f32.mrb[0].mxu0
        %v771 = vadd.f32 %v569, %v770
        %v772 = vpop.f32.mrb[0].mxu0
        %v773 = vadd.f32 %v573, %v772
        %v774 = vpop.f32.mrb[0].mxu0
        %v775 = vadd.f32 %v569, %v774
        %v776 = vpop.f32.mrb[0].mxu0
        %v777 = vadd.f32 %v573, %v776
        %778 = vmatprep.mubr.bf16.mxu0 0
        %779 = vmatmul.mubr.bf16.gmra.mrb[0].mxu0 %v517
        %v780 = vpop.f32.mrb[0].mxu0
        %v781 = vadd.f32 %v569, %v780
        %v782 = vpop.f32.mrb[0].mxu0
        %v783 = vadd.f32 %v573, %v782
        %v784 = vpop.f32.mrb[0].mxu0
        %v785 = vadd.f32 %v569, %v784
        %v786 = vpop.f32.mrb[0].mxu0
        %v787 = vadd.f32 %v573, %v786
        %788 = vmatprep.mubr.bf16.mxu0 0
        %789 = vmatmul.mubr.bf16.gmra.mrb[0].mxu0 %v518
        %v790 = vpop.f32.mrb[0].mxu0
        %v791 = vadd.f32 %v569, %v790
        %v792 = vpop.f32.mrb[0].mxu0
        %v793 = vadd.f32 %v573, %v792
        %v794 = vpop.f32.mrb[0].mxu0
        %v795 = vadd.f32 %v569, %v794
        %v796 = vpop.f32.mrb[0].mxu0
        %v797 = vadd.f32 %v573, %v796
        %798 = vmatprep.mubr.bf16.mxu0 0
        %799 = vmatmul.mubr.bf16.gmra.mrb[0].mxu0 %v519
        %v800 = vpop.f32.mrb[0].mxu0
        %v801 = vadd.f32 %v569, %v800
        %v802 = vpop.f32.mrb[0].mxu0
        %v803 = vadd.f32 %v573, %v802
        %v804 = vpop.f32.mrb[0].mxu0
        %v805 = vadd.f32 %v569, %v804
        %v806 = vpop.f32.mrb[0].mxu0
        %v807 = vadd.f32 %v573, %v806
        %808 = vmatprep.mubr.bf16.mxu0 0
        %809 = vmatmul.mubr.bf16.gmra.mrb[0].mxu0 %v520
        %v810 = vpop.f32.mrb[0].mxu0
        %v811 = vadd.f32 %v569, %v810
        %v812 = vpop.f32.mrb[0].mxu0
        %v813 = vadd.f32 %v573, %v812
        %v814 = vpop.f32.mrb[0].mxu0
        %v815 = vadd.f32 %v569, %v814
        %v816 = vpop.f32.mrb[0].mxu0
        %v817 = vadd.f32 %v573, %v816
        %818 = vmatprep.mubr.bf16.mxu0 0
        %819 = vmatmul.mubr.bf16.gmra.mrb[0].mxu0 %v521
        %v820 = vpop.f32.mrb[0].mxu0
        %v821 = vadd.f32 %v569, %v820
        %v822 = vpop.f32.mrb[0].mxu0
        %v823 = vadd.f32 %v573, %v822
        %v824 = vpop.f32.mrb[0].mxu0
        %v825 = vadd.f32 %v569, %v824
        %v826 = vpop.f32.mrb[0].mxu0
        %v827 = vadd.f32 %v573, %v826
        %828 = vmatprep.mubr.bf16.mxu0 0
        %829 = vmatmul.mubr.bf16.gmra.mrb[0].mxu0 %v522
        %v830 = vpop.f32.mrb[0].mxu0
        %v831 = vadd.f32 %v569, %v830
        %v832 = vpop.f32.mrb[0].mxu0
        %v833 = vadd.f32 %v573, %v832
        %v834 = vpop.f32.mrb[0].mxu0
        %v835 = vadd.f32 %v569, %v834
        %v836 = vpop.f32.mrb[0].mxu0
        %v837 = vadd.f32 %v573, %v836
        %838 = vmatprep.mubr.bf16.mxu0 0
        %839 = vmatmul.mubr.bf16.gmra.mrb[0].mxu0 %v523
        %v840 = vpop.f32.mrb[0].mxu0
        %v841 = vadd.f32 %v569, %v840
        %v842 = vpop.f32.mrb[0].mxu0
        %v843 = vadd.f32 %v573, %v842
        %v844 = vpop.f32.mrb[0].mxu0
        %v845 = vadd.f32 %v569, %v844
        %v846 = vpop.f32.mrb[0].mxu0
        %v847 = vadd.f32 %v573, %v846
        %848 = vmatprep.mubr.bf16.mxu0 0
        %849 = vmatmul.mubr.bf16.gmra.mrb[0].mxu0 %v524
        %v850 = vpop.f32.mrb[0].mxu0
        %v851 = vadd.f32 %v569, %v850
        %v852 = vpop.f32.mrb[0].mxu0
        %v853 = vadd.f32 %v573, %v852
        %v854 = vpop.f32.mrb[0].mxu0
        %v855 = vadd.f32 %v569, %v854
        %v856 = vpop.f32.mrb[0].mxu0
        %v857 = vadd.f32 %v573, %v856
        %858 = vmatprep.mubr.bf16.mxu0 0
        %859 = vmatmul.mubr.bf16.gmra.mrb[0].mxu0 %v525
        %v860 = vpop.f32.mrb[0].mxu0
        %v861 = vadd.f32 %v569, %v860
        %v862 = vpop.f32.mrb[0].mxu0
        %v863 = vadd.f32 %v573, %v862
        %v864 = vpop.f32.mrb[0].mxu0
        %v865 = vadd.f32 %v569, %v864
        %v866 = vpop.f32.mrb[0].mxu0
        %v867 = vadd.f32 %v573, %v866
        %868 = vmatprep.mubr.bf16.mxu0 0
        %869 = vmatmul.mubr.bf16.gmra.mrb[0].mxu0 %v526
        %v870 = vpop.f32.mrb[0].mxu0
        %v871 = vadd.f32 %v569, %v870
        %v872 = vpop.f32.mrb[0].mxu0
        %v873 = vadd.f32 %v573, %v872
        %v874 = vpop.f32.mrb[0].mxu0
        %v875 = vadd.f32 %v569, %v874
        %v876 = vpop.f32.mrb[0].mxu0
        %v877 = vadd.f32 %v573, %v876
        %878 = vmatprep.mubr.bf16.mxu0 0
        %879 = vmatmul.mubr.bf16.gmra.mrb[0].mxu0 %v527
        %v880 = vpop.f32.mrb[0].mxu0
        %v881 = vadd.f32 %v569, %v880
        %v882 = vpop.f32.mrb[0].mxu0
        %v883 = vadd.f32 %v573, %v882
        %v884 = vpop.f32.mrb[0].mxu0
        %v885 = vadd.f32 %v569, %v884
        %v886 = vpop.f32.mrb[0].mxu0
        %v887 = vadd.f32 %v573, %v886
        %888 = vmatprep.mubr.bf16.mxu0 0
        %889 = vmatmul.mubr.bf16.gmra.mrb[0].mxu0 %v528
        %v890 = vpop.f32.mrb[0].mxu0
        %v891 = vadd.f32 %v569, %v890
        %v892 = vpop.f32.mrb[0].mxu0
        %v893 = vadd.f32 %v573, %v892
        %v894 = vpop.f32.mrb[0].mxu0
        %v895 = vadd.f32 %v569, %v894
        %v896 = vpop.f32.mrb[0].mxu0
        %v897 = vadd.f32 %v573, %v896
        %898 = vmatprep.mubr.bf16.mxu0 0
        %899 = vmatmul.mubr.bf16.gmra.mrb[0].mxu0 %v529
        %v900 = vpop.f32.mrb[0].mxu0
        %v901 = vadd.f32 %v569, %v900
        %v902 = vpop.f32.mrb[0].mxu0
        %v903 = vadd.f32 %v573, %v902
        %v904 = vpop.f32.mrb[0].mxu0
        %v905 = vadd.f32 %v569, %v904
        %v906 = vpop.f32.mrb[0].mxu0
        %v907 = vadd.f32 %v573, %v906
        %908 = vmatprep.mubr.bf16.mxu0 0
        %909 = vmatmul.mubr.bf16.gmra.mrb[0].mxu0 %v530
        %v910 = vpop.f32.mrb[0].mxu0
        %v911 = vadd.f32 %v569, %v910
        %v912 = vpop.f32.mrb[0].mxu0
        %v913 = vadd.f32 %v573, %v912
        %v914 = vpop.f32.mrb[0].mxu0
        %v915 = vadd.f32 %v569, %v914
        %v916 = vpop.f32.mrb[0].mxu0
        %v917 = vadd.f32 %v573, %v916
        %918 = vmatprep.mubr.bf16.mxu0 0
        %919 = vmatmul.mubr.bf16.gmra.mrb[0].mxu0 %v531
        %v920 = vpop.f32.mrb[0].mxu0
        %v921 = vadd.f32 %v569, %v920
        %v922 = vpop.f32.mrb[0].mxu0
        %v923 = vadd.f32 %v573, %v922
        %v924 = vpop.f32.mrb[0].mxu0
        %v925 = vadd.f32 %v569, %v924
        %v926 = vpop.f32.mrb[0].mxu0
        %v927 = vadd.f32 %v573, %v926
        %928 = vdwg.mxu0
        %v929 = vpack.c.bf16 %v695, %v691
        %v930 = vpack.c.bf16 %v697, %v693
        %v931 = vpack.c.bf16 %v705, %v701
        %v932 = vpack.c.bf16 %v707, %v703
        %v933 = vpack.c.bf16 %v715, %v711
        %v934 = vpack.c.bf16 %v717, %v713
        %v935 = vpack.c.bf16 %v725, %v721
        %v936 = vpack.c.bf16 %v727, %v723
        %v937 = vpack.c.bf16 %v735, %v731
        %v938 = vpack.c.bf16 %v737, %v733
        %v939 = vpack.c.bf16 %v745, %v741
        %v940 = vpack.c.bf16 %v747, %v743
        %v941 = vpack.c.bf16 %v755, %v751
        %v942 = vpack.c.bf16 %v757, %v753
        %v943 = vpack.c.bf16 %v765, %v761
        %v944 = vpack.c.bf16 %v767, %v763
        %v945 = vpack.c.bf16 %v775, %v771
        %v946 = vpack.c.bf16 %v777, %v773
        %v947 = vpack.c.bf16 %v785, %v781
        %v948 = vpack.c.bf16 %v787, %v783
        %v949 = vpack.c.bf16 %v795, %v791
        %v950 = vpack.c.bf16 %v797, %v793
        %v951 = vpack.c.bf16 %v805, %v801
        %v952 = vpack.c.bf16 %v807, %v803
        %v953 = vpack.c.bf16 %v815, %v811
        %v954 = vpack.c.bf16 %v817, %v813
        %v955 = vpack.c.bf16 %v825, %v821
        %v956 = vpack.c.bf16 %v827, %v823
        %v957 = vpack.c.bf16 %v835, %v831
        %v958 = vpack.c.bf16 %v837, %v833
        %v959 = vpack.c.bf16 %v845, %v841
        %v960 = vpack.c.bf16 %v847, %v843
        %v961 = vpack.c.bf16 %v855, %v851
        %v962 = vpack.c.bf16 %v857, %v853
        %v963 = vpack.c.bf16 %v865, %v861
        %v964 = vpack.c.bf16 %v867, %v863
        %v965 = vpack.c.bf16 %v875, %v871
        %v966 = vpack.c.bf16 %v877, %v873
        %v967 = vpack.c.bf16 %v885, %v881
        %v968 = vpack.c.bf16 %v887, %v883
        %v969 = vpack.c.bf16 %v895, %v891
        %v970 = vpack.c.bf16 %v897, %v893
        %v971 = vpack.c.bf16 %v905, %v901
        %v972 = vpack.c.bf16 %v907, %v903
        %v973 = vpack.c.bf16 %v915, %v911
        %v974 = vpack.c.bf16 %v917, %v913
        %v975 = vpack.c.bf16 %v925, %v921
        %v976 = vpack.c.bf16 %v927, %v923
        %977 = vmatprep.subr.bf16.mxu0 %v946
        %978 = vmatpush1.bf16.xpose.msra.mxu0 %v945
        %979 = vmatprep.subr.bf16.mxu0 %v948
        %980 = vmatpush1.bf16.xpose.msra.mxu0 %v947
        %981 = vmatprep.subr.bf16.mxu0 %v950
        %982 = vmatpush1.bf16.xpose.msra.mxu0 %v949
        %983 = vmatprep.subr.bf16.mxu0 %v952
        %984 = vmatpush1.bf16.xpose.msra.mxu0 %v951
        %985 = vmatprep.subr.bf16.mxu0 %v954
        %986 = vmatpush1.bf16.xpose.msra.mxu0 %v953
        %987 = vmatprep.subr.bf16.mxu0 %v956
        %988 = vmatpush1.bf16.xpose.msra.mxu0 %v955
        %989 = vmatprep.subr.bf16.mxu0 %v958
        %990 = vmatpush1.bf16.xpose.msra.mxu0 %v957
        %991 = vmatprep.subr.bf16.mxu0 %v960
        %992 = vmatpush1.bf16.xpose.msra.mxu0 %v959
        %993 = vmatprep.subr.bf16.mxu0 %v962
        %994 = vmatpush1.bf16.xpose.msra.mxu0 %v961
        %995 = vmatprep.subr.bf16.mxu0 %v964
        %996 = vmatpush1.bf16.xpose.msra.mxu0 %v963
        %997 = vmatprep.subr.bf16.mxu0 %v966
        %998 = vmatpush1.bf16.xpose.msra.mxu0 %v965
        %999 = vmatprep.subr.bf16.mxu0 %v968
        %1000 = vmatpush1.bf16.xpose.msra.mxu0 %v967
        %1001 = vmatprep.subr.bf16.mxu0 %v970
        %1002 = vmatpush1.bf16.xpose.msra.mxu0 %v969
        %1003 = vmatprep.subr.bf16.mxu0 %v972
        %1004 = vmatpush1.bf16.xpose.msra.mxu0 %v971
        %1005 = vmatprep.subr.bf16.mxu0 %v974
        %1006 = vmatpush1.bf16.xpose.msra.mxu0 %v973
        %1007 = vmatprep.subr.bf16.mxu0 %v976
        %1008 = vmatpush1.bf16.xpose.msra.mxu0 %v975
        %1009 = vmatprep.mubr.bf16.mxu0 %v930
        %1010 = vmatmul.mubr.bf16.gmra.mrb[0].mxu0 %v929
        %v1011 = vpop.f32.mrb[0].mxu0
        %v1012 = vadd.f32 0.0, %v1011
        %v1013 = vpop.f32.mrb[0].mxu0
        %v1014 = vadd.f32 0.0, %v1013
        %v1015 = vpop.f32.mrb[0].mxu0
        %v1016 = vadd.f32 0.0, %v1015
        %v1017 = vpop.f32.mrb[0].mxu0
        %v1018 = vadd.f32 0.0, %v1017
        %1019 = vmatprep.mubr.bf16.mxu0 %v932
        %1020 = vmatmul.mubr.bf16.gmra.mrb[0].mxu0 %v931
        %v1021 = vpop.f32.mrb[0].mxu0
        %v1022 = vadd.f32 0.0, %v1021
        %v1023 = vpop.f32.mrb[0].mxu0
        %v1024 = vadd.f32 0.0, %v1023
        %v1025 = vpop.f32.mrb[0].mxu0
        %v1026 = vadd.f32 0.0, %v1025
        %v1027 = vpop.f32.mrb[0].mxu0
        %v1028 = vadd.f32 0.0, %v1027
        %1029 = vmatprep.mubr.bf16.mxu0 %v934
        %1030 = vmatmul.mubr.bf16.gmra.mrb[0].mxu0 %v933
        %v1031 = vpop.f32.mrb[0].mxu0
        %v1032 = vadd.f32 0.0, %v1031
        %v1033 = vpop.f32.mrb[0].mxu0
        %v1034 = vadd.f32 0.0, %v1033
        %v1035 = vpop.f32.mrb[0].mxu0
        %v1036 = vadd.f32 0.0, %v1035
        %v1037 = vpop.f32.mrb[0].mxu0
        %v1038 = vadd.f32 0.0, %v1037
        %1039 = vmatprep.mubr.bf16.mxu0 %v936
        %1040 = vmatmul.mubr.bf16.gmra.mrb[0].mxu0 %v935
        %v1041 = vpop.f32.mrb[0].mxu0
        %v1042 = vadd.f32 0.0, %v1041
        %v1043 = vpop.f32.mrb[0].mxu0
        %v1044 = vadd.f32 0.0, %v1043
        %v1045 = vpop.f32.mrb[0].mxu0
        %v1046 = vadd.f32 0.0, %v1045
        %v1047 = vpop.f32.mrb[0].mxu0
        %v1048 = vadd.f32 0.0, %v1047
        %1049 = vmatprep.mubr.bf16.mxu0 %v938
        %1050 = vmatmul.mubr.bf16.gmra.mrb[0].mxu0 %v937
        %v1051 = vpop.f32.mrb[0].mxu0
        %v1052 = vadd.f32 0.0, %v1051
        %v1053 = vpop.f32.mrb[0].mxu0
        %v1054 = vadd.f32 0.0, %v1053
        %v1055 = vpop.f32.mrb[0].mxu0
        %v1056 = vadd.f32 0.0, %v1055
        %v1057 = vpop.f32.mrb[0].mxu0
        %v1058 = vadd.f32 0.0, %v1057
        %1059 = vmatprep.mubr.bf16.mxu0 %v940
        %1060 = vmatmul.mubr.bf16.gmra.mrb[0].mxu0 %v939
        %v1061 = vpop.f32.mrb[0].mxu0
        %v1062 = vadd.f32 0.0, %v1061
        %v1063 = vpop.f32.mrb[0].mxu0
        %v1064 = vadd.f32 0.0, %v1063
        %v1065 = vpop.f32.mrb[0].mxu0
        %v1066 = vadd.f32 0.0, %v1065
        %v1067 = vpop.f32.mrb[0].mxu0
        %v1068 = vadd.f32 0.0, %v1067
        %1069 = vmatprep.mubr.bf16.mxu0 %v942
        %1070 = vmatmul.mubr.bf16.gmra.mrb[0].mxu0 %v941
        %v1071 = vpop.f32.mrb[0].mxu0
        %v1072 = vadd.f32 0.0, %v1071
        %v1073 = vpop.f32.mrb[0].mxu0
        %v1074 = vadd.f32 0.0, %v1073
        %v1075 = vpop.f32.mrb[0].mxu0
        %v1076 = vadd.f32 0.0, %v1075
        %v1077 = vpop.f32.mrb[0].mxu0
        %v1078 = vadd.f32 0.0, %v1077
        %1079 = vmatprep.mubr.bf16.mxu0 %v944
        %1080 = vmatmul.mubr.bf16.gmra.mrb[0].mxu0 %v943
        %v1081 = vpop.f32.mrb[0].mxu0
        %v1082 = vadd.f32 0.0, %v1081
        %v1083 = vpop.f32.mrb[0].mxu0
        %v1084 = vadd.f32 0.0, %v1083
        %v1085 = vpop.f32.mrb[0].mxu0
        %v1086 = vadd.f32 0.0, %v1085
        %v1087 = vpop.f32.mrb[0].mxu0
        %v1088 = vadd.f32 0.0, %v1087
        %1089 = vdwg.mxu0
        %v1090 = vmax.f32 %v1012, %v1014
        %1091 = vmax.xlane.f32.xlu0 %v1090
        %v1092 = vpop.xlane.xlu0 %1091
        %v1093 = vmax.f32 %v1016, %v1018
        %1094 = vmax.xlane.f32.xlu0 %v1093
        %v1095 = vpop.xlane.xlu0 %1094
        %v1096 = vmax.f32 %v1022, %v1024
        %1097 = vmax.xlane.f32.xlu0 %v1096
        %v1098 = vpop.xlane.xlu0 %1097
        %v1099 = vmax.f32 %v1026, %v1028
        %1100 = vmax.xlane.f32.xlu0 %v1099
        %v1101 = vpop.xlane.xlu0 %1100
        %v1102 = vmax.f32 %v1032, %v1034
        %1103 = vmax.xlane.f32.xlu0 %v1102
        %v1104 = vpop.xlane.xlu0 %1103
        %v1105 = vmax.f32 %v1036, %v1038
        %1106 = vmax.xlane.f32.xlu0 %v1105
        %v1107 = vpop.xlane.xlu0 %1106
        %v1108 = vmax.f32 %v1042, %v1044
        %1109 = vmax.xlane.f32.xlu0 %v1108
        %v1110 = vpop.xlane.xlu0 %1109
        %v1111 = vmax.f32 %v1046, %v1048
        %1112 = vmax.xlane.f32.xlu0 %v1111
        %v1113 = vpop.xlane.xlu0 %1112
        %v1114 = vmax.f32 %v1052, %v1054
        %1115 = vmax.xlane.f32.xlu0 %v1114
        %v1116 = vpop.xlane.xlu0 %1115
        %v1117 = vmax.f32 %v1056, %v1058
        %1118 = vmax.xlane.f32.xlu0 %v1117
        %v1119 = vpop.xlane.xlu0 %1118
        %v1120 = vmax.f32 %v1062, %v1064
        %1121 = vmax.xlane.f32.xlu0 %v1120
        %v1122 = vpop.xlane.xlu0 %1121
        %v1123 = vmax.f32 %v1066, %v1068
        %1124 = vmax.xlane.f32.xlu0 %v1123
        %v1125 = vpop.xlane.xlu0 %1124
        %v1126 = vmax.f32 %v1072, %v1074
        %1127 = vmax.xlane.f32.xlu0 %v1126
        %v1128 = vpop.xlane.xlu0 %1127
        %v1129 = vmax.f32 %v1076, %v1078
        %1130 = vmax.xlane.f32.xlu0 %v1129
        %v1131 = vpop.xlane.xlu0 %1130
        %v1132 = vmax.f32 %v1082, %v1084
        %1133 = vmax.xlane.f32.xlu0 %v1132
        %v1134 = vpop.xlane.xlu0 %1133
        %v1135 = vmax.f32 %v1086, %v1088
        %1136 = vmax.xlane.f32.xlu0 %v1135
        %v1137 = vpop.xlane.xlu0 %1136
        %v1138 = vsub.f32 %v1012, %v1092
        %v1139 = vsub.f32 %v1014, %v1092
        %v1140 = vsub.f32 %v1016, %v1095
        %v1141 = vsub.f32 %v1018, %v1095
        %v1142 = vsub.f32 %v1022, %v1098
        %v1143 = vsub.f32 %v1024, %v1098
        %v1144 = vsub.f32 %v1026, %v1101
        %v1145 = vsub.f32 %v1028, %v1101
        %v1146 = vsub.f32 %v1032, %v1104
        %v1147 = vsub.f32 %v1034, %v1104
        %v1148 = vsub.f32 %v1036, %v1107
        %v1149 = vsub.f32 %v1038, %v1107
        %v1150 = vsub.f32 %v1042, %v1110
        %v1151 = vsub.f32 %v1044, %v1110
        %v1152 = vsub.f32 %v1046, %v1113
        %v1153 = vsub.f32 %v1048, %v1113
        %v1154 = vsub.f32 %v1052, %v1116
        %v1155 = vsub.f32 %v1054, %v1116
        %v1156 = vsub.f32 %v1056, %v1119
        %v1157 = vsub.f32 %v1058, %v1119
        %v1158 = vsub.f32 %v1062, %v1122
        %v1159 = vsub.f32 %v1064, %v1122
        %v1160 = vsub.f32 %v1066, %v1125
        %v1161 = vsub.f32 %v1068, %v1125
        %v1162 = vsub.f32 %v1072, %v1128
        %v1163 = vsub.f32 %v1074, %v1128
        %v1164 = vsub.f32 %v1076, %v1131
        %v1165 = vsub.f32 %v1078, %v1131
        %v1166 = vsub.f32 %v1082, %v1134
        %v1167 = vsub.f32 %v1084, %v1134
        %v1168 = vsub.f32 %v1086, %v1137
        %v1169 = vsub.f32 %v1088, %v1137
        %v1170 = vmul.f32 %v1138, 1.442695
        %v1171 = vpow.pop %v1170
        %v1172 = vmul.f32 %v1139, 1.442695
        %v1173 = vpow.pop %v1172
        %v1174 = vmul.f32 %v1140, 1.442695
        %v1175 = vpow.pop %v1174
        %v1176 = vmul.f32 %v1141, 1.442695
        %v1177 = vpow.pop %v1176
        %v1178 = vmul.f32 %v1142, 1.442695
        %v1179 = vpow.pop %v1178
        %v1180 = vmul.f32 %v1143, 1.442695
        %v1181 = vpow.pop %v1180
        %v1182 = vmul.f32 %v1144, 1.442695
        %v1183 = vpow.pop %v1182
        %v1184 = vmul.f32 %v1145, 1.442695
        %v1185 = vpow.pop %v1184
        %v1186 = vmul.f32 %v1146, 1.442695
        %v1187 = vpow.pop %v1186
        %v1188 = vmul.f32 %v1147, 1.442695
        %v1189 = vpow.pop %v1188
        %v1190 = vmul.f32 %v1148, 1.442695
        %v1191 = vpow.pop %v1190
        %v1192 = vmul.f32 %v1149, 1.442695
        %v1193 = vpow.pop %v1192
        %v1194 = vmul.f32 %v1150, 1.442695
        %v1195 = vpow.pop %v1194
        %v1196 = vmul.f32 %v1151, 1.442695
        %v1197 = vpow.pop %v1196
        %v1198 = vmul.f32 %v1152, 1.442695
        %v1199 = vpow.pop %v1198
        %v1200 = vmul.f32 %v1153, 1.442695
        %v1201 = vpow.pop %v1200
        %v1202 = vmul.f32 %v1154, 1.442695
        %v1203 = vpow.pop %v1202
        %v1204 = vmul.f32 %v1155, 1.442695
        %v1205 = vpow.pop %v1204
        %v1206 = vmul.f32 %v1156, 1.442695
        %v1207 = vpow.pop %v1206
        %v1208 = vmul.f32 %v1157, 1.442695
        %v1209 = vpow.pop %v1208
        %v1210 = vmul.f32 %v1158, 1.442695
        %v1211 = vpow.pop %v1210
        %v1212 = vmul.f32 %v1159, 1.442695
        %v1213 = vpow.pop %v1212
        %v1214 = vmul.f32 %v1160, 1.442695
        %v1215 = vpow.pop %v1214
        %v1216 = vmul.f32 %v1161, 1.442695
        %v1217 = vpow.pop %v1216
        %v1218 = vmul.f32 %v1162, 1.442695
        %v1219 = vpow.pop %v1218
        %v1220 = vmul.f32 %v1163, 1.442695
        %v1221 = vpow.pop %v1220
        %v1222 = vmul.f32 %v1164, 1.442695
        %v1223 = vpow.pop %v1222
        %v1224 = vmul.f32 %v1165, 1.442695
        %v1225 = vpow.pop %v1224
        %v1226 = vmul.f32 %v1166, 1.442695
        %v1227 = vpow.pop %v1226
        %v1228 = vmul.f32 %v1167, 1.442695
        %v1229 = vpow.pop %v1228
        %v1230 = vmul.f32 %v1168, 1.442695
        %v1231 = vpow.pop %v1230
        %v1232 = vmul.f32 %v1169, 1.442695
        %v1233 = vpow.pop %v1232
        %v1234 = vadd.f32 %v1171, %v1173
        %1235 = vadd.xlane.f32.xlu0 %v1234
        %v1236 = vpop.xlane.xlu0 %1235
        %v1237 = vadd.f32 %v1175, %v1177
        %1238 = vadd.xlane.f32.xlu0 %v1237
        %v1239 = vpop.xlane.xlu0 %1238
        %v1240 = vadd.f32 %v1179, %v1181
        %1241 = vadd.xlane.f32.xlu0 %v1240
        %v1242 = vpop.xlane.xlu0 %1241
        %v1243 = vadd.f32 %v1183, %v1185
        %1244 = vadd.xlane.f32.xlu0 %v1243
        %v1245 = vpop.xlane.xlu0 %1244
        %v1246 = vadd.f32 %v1187, %v1189
        %1247 = vadd.xlane.f32.xlu0 %v1246
        %v1248 = vpop.xlane.xlu0 %1247
        %v1249 = vadd.f32 %v1191, %v1193
        %1250 = vadd.xlane.f32.xlu0 %v1249
        %v1251 = vpop.xlane.xlu0 %1250
        %v1252 = vadd.f32 %v1195, %v1197
        %1253 = vadd.xlane.f32.xlu0 %v1252
        %v1254 = vpop.xlane.xlu0 %1253
        %v1255 = vadd.f32 %v1199, %v1201
        %1256 = vadd.xlane.f32.xlu0 %v1255
        %v1257 = vpop.xlane.xlu0 %1256
        %v1258 = vadd.f32 %v1203, %v1205
        %1259 = vadd.xlane.f32.xlu0 %v1258
        %v1260 = vpop.xlane.xlu0 %1259
        %v1261 = vadd.f32 %v1207, %v1209
        %1262 = vadd.xlane.f32.xlu0 %v1261
        %v1263 = vpop.xlane.xlu0 %1262
        %v1264 = vadd.f32 %v1211, %v1213
        %1265 = vadd.xlane.f32.xlu0 %v1264
        %v1266 = vpop.xlane.xlu0 %1265
        %v1267 = vadd.f32 %v1215, %v1217
        %1268 = vadd.xlane.f32.xlu0 %v1267
        %v1269 = vpop.xlane.xlu0 %1268
        %v1270 = vadd.f32 %v1219, %v1221
        %1271 = vadd.xlane.f32.xlu0 %v1270
        %v1272 = vpop.xlane.xlu0 %1271
        %v1273 = vadd.f32 %v1223, %v1225
        %1274 = vadd.xlane.f32.xlu0 %v1273
        %v1275 = vpop.xlane.xlu0 %1274
        %v1276 = vadd.f32 %v1227, %v1229
        %1277 = vadd.xlane.f32.xlu0 %v1276
        %v1278 = vpop.xlane.xlu0 %1277
        %v1279 = vadd.f32 %v1231, %v1233
        %1280 = vadd.xlane.f32.xlu0 %v1279
        %v1281 = vpop.xlane.xlu0 %1280
        %v1282 = vmul.f32 %v1236, 0.2
        %v1283 = vmul.f32 %v1239, 0.2
        %v1284 = vmul.f32 %v1242, 0.2
        %v1285 = vmul.f32 %v1245, 0.2
        %v1286 = vmul.f32 %v1248, 0.2
        %v1287 = vmul.f32 %v1251, 0.2
        %v1288 = vmul.f32 %v1254, 0.2
        %v1289 = vmul.f32 %v1257, 0.2
        %v1290 = vmul.f32 %v1260, 0.2
        %v1291 = vmul.f32 %v1263, 0.2
        %v1292 = vmul.f32 %v1266, 0.2
        %v1293 = vmul.f32 %v1269, 0.2
        %v1294 = vmul.f32 %v1272, 0.2
        %v1295 = vmul.f32 %v1275, 0.2
        %v1296 = vmul.f32 %v1278, 0.2
        %v1297 = vmul.f32 %v1281, 0.2
        %v1298 = vrcp.pop %v1282
        %v1299 = vrcp.pop %v1283
        %v1300 = vrcp.pop %v1284
        %v1301 = vrcp.pop %v1285
        %v1302 = vrcp.pop %v1286
        %v1303 = vrcp.pop %v1287
        %v1304 = vrcp.pop %v1288
        %v1305 = vrcp.pop %v1289
        %v1306 = vrcp.pop %v1290
        %v1307 = vrcp.pop %v1291
        %v1308 = vrcp.pop %v1292
        %v1309 = vrcp.pop %v1293
        %v1310 = vrcp.pop %v1294
        %v1311 = vrcp.pop %v1295
        %v1312 = vrcp.pop %v1296
        %v1313 = vrcp.pop %v1297
        %v1314 = vld [vmem:[%s318] sm:$0xff]
        %v1315 = vld [vmem:[%s318 + $0x8] sm:$0xff]
        %v1316 = vld [vmem:[%s318 + $0x10] sm:$0xff]
        %v1317 = vld [vmem:[%s318 + $0x18] sm:$0xff]
        %v1318 = vld [vmem:[%s318 + $0x20] sm:$0xff]
        %v1319 = vld [vmem:[%s318 + $0x28] sm:$0xff]
        %v1320 = vld [vmem:[%s318 + $0x30] sm:$0xff]
        %v1321 = vld [vmem:[%s318 + $0x38] sm:$0xff]
        %v1322 = vld [vmem:[%s318 + $0x40] sm:$0xff]
        %v1323 = vld [vmem:[%s318 + $0x48] sm:$0xff]
        %v1324 = vld [vmem:[%s318 + $0x50] sm:$0xff]
        %v1325 = vld [vmem:[%s318 + $0x58] sm:$0xff]
        %v1326 = vld [vmem:[%s318 + $0x60] sm:$0xff]
        %v1327 = vld [vmem:[%s318 + $0x68] sm:$0xff]
        %v1328 = vld [vmem:[%s318 + $0x70] sm:$0xff]
        %v1329 = vld [vmem:[%s318 + $0x78] sm:$0xff]
        %v1330 = vld [vmem:[%s318 + $0x80] sm:$0xff]
        %v1331 = vld [vmem:[%s318 + $0x88] sm:$0xff]
        %v1332 = vld [vmem:[%s318 + $0x90] sm:$0xff]
        %v1333 = vld [vmem:[%s318 + $0x98] sm:$0xff]
        %v1334 = vld [vmem:[%s318 + $0xa0] sm:$0xff]
        %v1335 = vld [vmem:[%s318 + $0xa8] sm:$0xff]
        %v1336 = vld [vmem:[%s318 + $0xb0] sm:$0xff]
        %v1337 = vld [vmem:[%s318 + $0xb8] sm:$0xff]
        %v1338 = vld [vmem:[%s318 + $0xc0] sm:$0xff]
        %v1339 = vld [vmem:[%s318 + $0xc8] sm:$0xff]
        %v1340 = vld [vmem:[%s318 + $0xd0] sm:$0xff]
        %v1341 = vld [vmem:[%s318 + $0xd8] sm:$0xff]
        %v1342 = vld [vmem:[%s318 + $0xe0] sm:$0xff]
        %v1343 = vld [vmem:[%s318 + $0xe8] sm:$0xff]
        %v1344 = vld [vmem:[%s318 + $0xf0] sm:$0xff]
        %v1345 = vld [vmem:[%s318 + $0xf8] sm:$0xff]
        %vm1346 = vcmp.ge.f32.partialorder %v1314, 0.8
        %vm1347 = vcmp.ge.f32.partialorder %v1315, 0.8
        %vm1348 = vcmp.ge.f32.partialorder %v1316, 0.8
        %vm1349 = vcmp.ge.f32.partialorder %v1317, 0.8
        %vm1350 = vcmp.ge.f32.partialorder %v1318, 0.8
        %vm1351 = vcmp.ge.f32.partialorder %v1319, 0.8
        %vm1352 = vcmp.ge.f32.partialorder %v1320, 0.8
        %vm1353 = vcmp.ge.f32.partialorder %v1321, 0.8
        %vm1354 = vcmp.ge.f32.partialorder %v1322, 0.8
        %vm1355 = vcmp.ge.f32.partialorder %v1323, 0.8
        %vm1356 = vcmp.ge.f32.partialorder %v1324, 0.8
        %vm1357 = vcmp.ge.f32.partialorder %v1325, 0.8
        %vm1358 = vcmp.ge.f32.partialorder %v1326, 0.8
        %vm1359 = vcmp.ge.f32.partialorder %v1327, 0.8
        %vm1360 = vcmp.ge.f32.partialorder %v1328, 0.8
        %vm1361 = vcmp.ge.f32.partialorder %v1329, 0.8
        %vm1362 = vcmp.ge.f32.partialorder %v1330, 0.8
        %vm1363 = vcmp.ge.f32.partialorder %v1331, 0.8
        %vm1364 = vcmp.ge.f32.partialorder %v1332, 0.8
        %vm1365 = vcmp.ge.f32.partialorder %v1333, 0.8
        %vm1366 = vcmp.ge.f32.partialorder %v1334, 0.8
        %vm1367 = vcmp.ge.f32.partialorder %v1335, 0.8
        %vm1368 = vcmp.ge.f32.partialorder %v1336, 0.8
        %vm1369 = vcmp.ge.f32.partialorder %v1337, 0.8
        %vm1370 = vcmp.ge.f32.partialorder %v1338, 0.8
        %vm1371 = vcmp.ge.f32.partialorder %v1339, 0.8
        %vm1372 = vcmp.ge.f32.partialorder %v1340, 0.8
        %vm1373 = vcmp.ge.f32.partialorder %v1341, 0.8
        %vm1374 = vcmp.ge.f32.partialorder %v1342, 0.8
        %vm1375 = vcmp.ge.f32.partialorder %v1343, 0.8
        %vm1376 = vcmp.ge.f32.partialorder %v1344, 0.8
        %vm1377 = vcmp.ge.f32.partialorder %v1345, 0.8
        %v1378 = vmul.f32 %v1171, %v1298
        %v1379 = vmul.f32 %v1173, %v1298
        %v1380 = vmul.f32 %v1175, %v1299
        %v1381 = vmul.f32 %v1177, %v1299
        %v1382 = vmul.f32 %v1179, %v1300
        %v1383 = vmul.f32 %v1181, %v1300
        %v1384 = vmul.f32 %v1183, %v1301
        %v1385 = vmul.f32 %v1185, %v1301
        %v1386 = vmul.f32 %v1187, %v1302
        %v1387 = vmul.f32 %v1189, %v1302
        %v1388 = vmul.f32 %v1191, %v1303
        %v1389 = vmul.f32 %v1193, %v1303
        %v1390 = vmul.f32 %v1195, %v1304
        %v1391 = vmul.f32 %v1197, %v1304
        %v1392 = vmul.f32 %v1199, %v1305
        %v1393 = vmul.f32 %v1201, %v1305
        %v1394 = vmul.f32 %v1203, %v1306
        %v1395 = vmul.f32 %v1205, %v1306
        %v1396 = vmul.f32 %v1207, %v1307
        %v1397 = vmul.f32 %v1209, %v1307
        %v1398 = vmul.f32 %v1211, %v1308
        %v1399 = vmul.f32 %v1213, %v1308
        %v1400 = vmul.f32 %v1215, %v1309
        %v1401 = vmul.f32 %v1217, %v1309
        %v1402 = vmul.f32 %v1219, %v1310
        %v1403 = vmul.f32 %v1221, %v1310
        %v1404 = vmul.f32 %v1223, %v1311
        %v1405 = vmul.f32 %v1225, %v1311
        %v1406 = vmul.f32 %v1227, %v1312
        %v1407 = vmul.f32 %v1229, %v1312
        %v1408 = vmul.f32 %v1231, %v1313
        %v1409 = vmul.f32 %v1233, %v1313
        %v1410 = vsel %vm1346, %v1378, 0.0
        %v1411 = vsel %vm1347, %v1379, 0.0
        %v1412 = vsel %vm1348, %v1380, 0.0
        %v1413 = vsel %vm1349, %v1381, 0.0
        %v1414 = vsel %vm1350, %v1382, 0.0
        %v1415 = vsel %vm1351, %v1383, 0.0
        %v1416 = vsel %vm1352, %v1384, 0.0
        %v1417 = vsel %vm1353, %v1385, 0.0
        %v1418 = vsel %vm1354, %v1386, 0.0
        %v1419 = vsel %vm1355, %v1387, 0.0
        %v1420 = vsel %vm1356, %v1388, 0.0
        %v1421 = vsel %vm1357, %v1389, 0.0
        %v1422 = vsel %vm1358, %v1390, 0.0
        %v1423 = vsel %vm1359, %v1391, 0.0
        %v1424 = vsel %vm1360, %v1392, 0.0
        %v1425 = vsel %vm1361, %v1393, 0.0
        %v1426 = vsel %vm1362, %v1394, 0.0
        %v1427 = vsel %vm1363, %v1395, 0.0
        %v1428 = vsel %vm1364, %v1396, 0.0
        %v1429 = vsel %vm1365, %v1397, 0.0
        %v1430 = vsel %vm1366, %v1398, 0.0
        %v1431 = vsel %vm1367, %v1399, 0.0
        %v1432 = vsel %vm1368, %v1400, 0.0
        %v1433 = vsel %vm1369, %v1401, 0.0
        %v1434 = vsel %vm1370, %v1402, 0.0
        %v1435 = vsel %vm1371, %v1403, 0.0
        %v1436 = vsel %vm1372, %v1404, 0.0
        %v1437 = vsel %vm1373, %v1405, 0.0
        %v1438 = vsel %vm1374, %v1406, 0.0
        %v1439 = vsel %vm1375, %v1407, 0.0
        %v1440 = vsel %vm1376, %v1408, 0.0
        %v1441 = vsel %vm1377, %v1409, 0.0
        %v1442 = vpack.c.bf16 %v1412, %v1410
        %v1443 = vpack.c.bf16 %v1413, %v1411
        %v1444 = vpack.c.bf16 %v1416, %v1414
        %v1445 = vpack.c.bf16 %v1417, %v1415
        %v1446 = vpack.c.bf16 %v1420, %v1418
        %v1447 = vpack.c.bf16 %v1421, %v1419
        %v1448 = vpack.c.bf16 %v1424, %v1422
        %v1449 = vpack.c.bf16 %v1425, %v1423
        %v1450 = vpack.c.bf16 %v1428, %v1426
        %v1451 = vpack.c.bf16 %v1429, %v1427
        %v1452 = vpack.c.bf16 %v1432, %v1430
        %v1453 = vpack.c.bf16 %v1433, %v1431
        %v1454 = vpack.c.bf16 %v1436, %v1434
        %v1455 = vpack.c.bf16 %v1437, %v1435
        %v1456 = vpack.c.bf16 %v1440, %v1438
        %v1457 = vpack.c.bf16 %v1441, %v1439
        %v1458 = vld [vmem:[#allocation8] sm:$0xff]
        %v1459 = vld [vmem:[#allocation8 + $0x8] sm:$0xff]
        %v1460 = vld [vmem:[#allocation8 + $0x10] sm:$0xff]
        %v1461 = vld [vmem:[#allocation8 + $0x18] sm:$0xff]
        %v1462 = vld [vmem:[#allocation8 + $0x20] sm:$0xff]
        %v1463 = vld [vmem:[#allocation8 + $0x28] sm:$0xff]
        %v1464 = vld [vmem:[#allocation8 + $0x30] sm:$0xff]
        %v1465 = vld [vmem:[#allocation8 + $0x38] sm:$0xff]
        %v1466 = vld [vmem:[#allocation8 + $0x40] sm:$0xff]
        %v1467 = vld [vmem:[#allocation8 + $0x48] sm:$0xff]
        %v1468 = vld [vmem:[#allocation8 + $0x50] sm:$0xff]
        %v1469 = vld [vmem:[#allocation8 + $0x58] sm:$0xff]
        %v1470 = vld [vmem:[#allocation8 + $0x60] sm:$0xff]
        %v1471 = vld [vmem:[#allocation8 + $0x68] sm:$0xff]
        %v1472 = vld [vmem:[#allocation8 + $0x70] sm:$0xff]
        %v1473 = vld [vmem:[#allocation8 + $0x78] sm:$0xff]
        %v1474 = vld [vmem:[#allocation8 + $0x80] sm:$0xff]
        %v1475 = vld [vmem:[#allocation8 + $0x88] sm:$0xff]
        %v1476 = vld [vmem:[#allocation8 + $0x90] sm:$0xff]
        %v1477 = vld [vmem:[#allocation8 + $0x98] sm:$0xff]
        %v1478 = vld [vmem:[#allocation8 + $0xa0] sm:$0xff]
        %v1479 = vld [vmem:[#allocation8 + $0xa8] sm:$0xff]
        %v1480 = vld [vmem:[#allocation8 + $0xb0] sm:$0xff]
        %v1481 = vld [vmem:[#allocation8 + $0xb8] sm:$0xff]
        %v1482 = vld [vmem:[#allocation8 + $0xc0] sm:$0xff]
        %v1483 = vld [vmem:[#allocation8 + $0xc8] sm:$0xff]
        %v1484 = vld [vmem:[#allocation8 + $0xd0] sm:$0xff]
        %v1485 = vld [vmem:[#allocation8 + $0xd8] sm:$0xff]
        %v1486 = vld [vmem:[#allocation8 + $0xe0] sm:$0xff]
        %v1487 = vld [vmem:[#allocation8 + $0xe8] sm:$0xff]
        %v1488 = vld [vmem:[#allocation8 + $0xf0] sm:$0xff]
        %v1489 = vld [vmem:[#allocation8 + $0xf8] sm:$0xff]
        %v1522 = vunpack.c.l.b16 %v1458
        %v1523 = vunpack.c.h.b16 %v1458
        %v1524 = vunpack.c.l.b16 %v1459
        %v1525 = vunpack.c.h.b16 %v1459
        %v1526 = vunpack.c.l.b16 %v1460
        %v1527 = vunpack.c.h.b16 %v1460
        %v1528 = vunpack.c.l.b16 %v1461
        %v1529 = vunpack.c.h.b16 %v1461
        %v1530 = vunpack.c.l.b16 %v1462
        %v1531 = vunpack.c.h.b16 %v1462
        %v1532 = vunpack.c.l.b16 %v1463
        %v1533 = vunpack.c.h.b16 %v1463
        %v1534 = vunpack.c.l.b16 %v1464
        %v1535 = vunpack.c.h.b16 %v1464
        %v1536 = vunpack.c.l.b16 %v1465
        %v1537 = vunpack.c.h.b16 %v1465
        %v1538 = vunpack.c.l.b16 %v1466
        %v1539 = vunpack.c.h.b16 %v1466
        %v1540 = vunpack.c.l.b16 %v1467
        %v1541 = vunpack.c.h.b16 %v1467
        %v1542 = vunpack.c.l.b16 %v1468
        %v1543 = vunpack.c.h.b16 %v1468
        %v1544 = vunpack.c.l.b16 %v1469
        %v1545 = vunpack.c.h.b16 %v1469
        %v1546 = vunpack.c.l.b16 %v1470
        %v1547 = vunpack.c.h.b16 %v1470
        %v1548 = vunpack.c.l.b16 %v1471
        %v1549 = vunpack.c.h.b16 %v1471
        %v1550 = vunpack.c.l.b16 %v1472
        %v1551 = vunpack.c.h.b16 %v1472
        %v1552 = vunpack.c.l.b16 %v1473
        %v1553 = vunpack.c.h.b16 %v1473
        %v1554 = vunpack.c.l.b16 %v1474
        %v1555 = vunpack.c.h.b16 %v1474
        %v1556 = vunpack.c.l.b16 %v1475
        %v1557 = vunpack.c.h.b16 %v1475
        %v1558 = vunpack.c.l.b16 %v1476
        %v1559 = vunpack.c.h.b16 %v1476
        %v1560 = vunpack.c.l.b16 %v1477
        %v1561 = vunpack.c.h.b16 %v1477
        %v1562 = vunpack.c.l.b16 %v1478
        %v1563 = vunpack.c.h.b16 %v1478
        %v1564 = vunpack.c.l.b16 %v1479
        %v1565 = vunpack.c.h.b16 %v1479
        %v1566 = vunpack.c.l.b16 %v1480
        %v1567 = vunpack.c.h.b16 %v1480
        %v1568 = vunpack.c.l.b16 %v1481
        %v1569 = vunpack.c.h.b16 %v1481
        %v1570 = vunpack.c.l.b16 %v1482
        %v1571 = vunpack.c.h.b16 %v1482
        %v1572 = vunpack.c.l.b16 %v1483
        %v1573 = vunpack.c.h.b16 %v1483
        %v1574 = vunpack.c.l.b16 %v1484
        %v1575 = vunpack.c.h.b16 %v1484
        %v1576 = vunpack.c.l.b16 %v1485
        %v1577 = vunpack.c.h.b16 %v1485
        %v1578 = vunpack.c.l.b16 %v1486
        %v1579 = vunpack.c.h.b16 %v1486
        %v1580 = vunpack.c.l.b16 %v1487
        %v1581 = vunpack.c.h.b16 %v1487
        %v1582 = vunpack.c.l.b16 %v1488
        %v1583 = vunpack.c.h.b16 %v1488
        %v1584 = vunpack.c.l.b16 %v1489
        %v1585 = vunpack.c.h.b16 %v1489
        %v1586 = vpack.c.b16 %v1524, %v1522
        %v1587 = vpack.c.b16 %v1525, %v1523
        %v1588 = vpack.c.b16 %v1528, %v1526
        %v1589 = vpack.c.b16 %v1529, %v1527
        %v1590 = vpack.c.b16 %v1532, %v1530
        %v1591 = vpack.c.b16 %v1533, %v1531
        %v1592 = vpack.c.b16 %v1536, %v1534
        %v1593 = vpack.c.b16 %v1537, %v1535
        %v1594 = vpack.c.b16 %v1540, %v1538
        %v1595 = vpack.c.b16 %v1541, %v1539
        %v1596 = vpack.c.b16 %v1544, %v1542
        %v1597 = vpack.c.b16 %v1545, %v1543
        %v1598 = vpack.c.b16 %v1548, %v1546
        %v1599 = vpack.c.b16 %v1549, %v1547
        %v1600 = vpack.c.b16 %v1552, %v1550
        %v1601 = vpack.c.b16 %v1553, %v1551
        %v1602 = vpack.c.b16 %v1556, %v1554
        %v1603 = vpack.c.b16 %v1557, %v1555
        %v1604 = vpack.c.b16 %v1560, %v1558
        %v1605 = vpack.c.b16 %v1561, %v1559
        %v1606 = vpack.c.b16 %v1564, %v1562
        %v1607 = vpack.c.b16 %v1565, %v1563
        %v1608 = vpack.c.b16 %v1568, %v1566
        %v1609 = vpack.c.b16 %v1569, %v1567
        %v1610 = vpack.c.b16 %v1572, %v1570
        %v1611 = vpack.c.b16 %v1573, %v1571
        %v1612 = vpack.c.b16 %v1576, %v1574
        %v1613 = vpack.c.b16 %v1577, %v1575
        %v1614 = vpack.c.b16 %v1580, %v1578
        %v1615 = vpack.c.b16 %v1581, %v1579
        %v1616 = vpack.c.b16 %v1584, %v1582
        %v1617 = vpack.c.b16 %v1585, %v1583
        %1650 = vmatprep.subr.bf16.mxu0 %v1587
        %1651 = vmatpush1.bf16.msra.mxu0 %v1586
        %1652 = vmatprep.subr.bf16.mxu0 %v1589
        %1653 = vmatpush1.bf16.msra.mxu0 %v1588
        %1654 = vmatprep.subr.bf16.mxu0 %v1591
        %1655 = vmatpush1.bf16.msra.mxu0 %v1590
        %1656 = vmatprep.subr.bf16.mxu0 %v1593
        %1657 = vmatpush1.bf16.msra.mxu0 %v1592
        %1658 = vmatprep.subr.bf16.mxu0 %v1595
        %1659 = vmatpush1.bf16.msra.mxu0 %v1594
        %1660 = vmatprep.subr.bf16.mxu0 %v1597
        %1661 = vmatpush1.bf16.msra.mxu0 %v1596
        %1662 = vmatprep.subr.bf16.mxu0 %v1599
        %1663 = vmatpush1.bf16.msra.mxu0 %v1598
        %1664 = vmatprep.subr.bf16.mxu0 %v1601
        %1665 = vmatpush1.bf16.msra.mxu0 %v1600
        %1666 = vmatprep.subr.bf16.mxu0 %v1603
        %1667 = vmatpush1.bf16.msra.mxu0 %v1602
        %1668 = vmatprep.subr.bf16.mxu0 %v1605
        %1669 = vmatpush1.bf16.msra.mxu0 %v1604
        %1670 = vmatprep.subr.bf16.mxu0 %v1607
        %1671 = vmatpush1.bf16.msra.mxu0 %v1606
        %1672 = vmatprep.subr.bf16.mxu0 %v1609
        %1673 = vmatpush1.bf16.msra.mxu0 %v1608
        %1674 = vmatprep.subr.bf16.mxu0 %v1611
        %1675 = vmatpush1.bf16.msra.mxu0 %v1610
        %1676 = vmatprep.subr.bf16.mxu0 %v1613
        %1677 = vmatpush1.bf16.msra.mxu0 %v1612
        %1678 = vmatprep.subr.bf16.mxu0 %v1615
        %1679 = vmatpush1.bf16.msra.mxu0 %v1614
        %1680 = vmatprep.subr.bf16.mxu0 %v1617
        %1681 = vmatpush1.bf16.msra.mxu0 %v1616
        %1682 = vmatprep.mubr.bf16.mxu0 %v1443
        %1683 = vmatmul.mubr.bf16.gmra.mrb[0].mxu0 %v1442
        %v1684 = vpop.f32.mrb[0].mxu0
        %v1685 = vadd.f32 0.0, %v1684
        %v1686 = vpop.f32.mrb[0].mxu0
        %v1687 = vadd.f32 0.0, %v1686
        %v1688 = vpop.f32.mrb[0].mxu0
        %v1689 = vadd.f32 0.0, %v1688
        %v1690 = vpop.f32.mrb[0].mxu0
        %v1691 = vadd.f32 0.0, %v1690
        %1692 = vmatprep.mubr.bf16.mxu0 %v1445
        %1693 = vmatmul.mubr.bf16.gmra.mrb[0].mxu0 %v1444
        %v1694 = vpop.f32.mrb[0].mxu0
        %v1695 = vadd.f32 0.0, %v1694
        %v1696 = vpop.f32.mrb[0].mxu0
        %v1697 = vadd.f32 0.0, %v1696
        %v1698 = vpop.f32.mrb[0].mxu0
        %v1699 = vadd.f32 0.0, %v1698
        %v1700 = vpop.f32.mrb[0].mxu0
        %v1701 = vadd.f32 0.0, %v1700
        %1702 = vmatprep.mubr.bf16.mxu0 %v1447
        %1703 = vmatmul.mubr.bf16.gmra.mrb[0].mxu0 %v1446
        %v1704 = vpop.f32.mrb[0].mxu0
        %v1705 = vadd.f32 0.0, %v1704
        %v1706 = vpop.f32.mrb[0].mxu0
        %v1707 = vadd.f32 0.0, %v1706
        %v1708 = vpop.f32.mrb[0].mxu0
        %v1709 = vadd.f32 0.0, %v1708
        %v1710 = vpop.f32.mrb[0].mxu0
        %v1711 = vadd.f32 0.0, %v1710
        %1712 = vmatprep.mubr.bf16.mxu0 %v1449
        %1713 = vmatmul.mubr.bf16.gmra.mrb[0].mxu0 %v1448
        %v1714 = vpop.f32.mrb[0].mxu0
        %v1715 = vadd.f32 0.0, %v1714
        %v1716 = vpop.f32.mrb[0].mxu0
        %v1717 = vadd.f32 0.0, %v1716
        %v1718 = vpop.f32.mrb[0].mxu0
        %v1719 = vadd.f32 0.0, %v1718
        %v1720 = vpop.f32.mrb[0].mxu0
        %v1721 = vadd.f32 0.0, %v1720
        %1722 = vmatprep.mubr.bf16.mxu0 %v1451
        %1723 = vmatmul.mubr.bf16.gmra.mrb[0].mxu0 %v1450
        %v1724 = vpop.f32.mrb[0].mxu0
        %v1725 = vadd.f32 0.0, %v1724
        %v1726 = vpop.f32.mrb[0].mxu0
        %v1727 = vadd.f32 0.0, %v1726
        %v1728 = vpop.f32.mrb[0].mxu0
        %v1729 = vadd.f32 0.0, %v1728
        %v1730 = vpop.f32.mrb[0].mxu0
        %v1731 = vadd.f32 0.0, %v1730
        %1732 = vmatprep.mubr.bf16.mxu0 %v1453
        %1733 = vmatmul.mubr.bf16.gmra.mrb[0].mxu0 %v1452
        %v1734 = vpop.f32.mrb[0].mxu0
        %v1735 = vadd.f32 0.0, %v1734
        %v1736 = vpop.f32.mrb[0].mxu0
        %v1737 = vadd.f32 0.0, %v1736
        %v1738 = vpop.f32.mrb[0].mxu0
        %v1739 = vadd.f32 0.0, %v1738
        %v1740 = vpop.f32.mrb[0].mxu0
        %v1741 = vadd.f32 0.0, %v1740
        %1742 = vmatprep.mubr.bf16.mxu0 %v1455
        %1743 = vmatmul.mubr.bf16.gmra.mrb[0].mxu0 %v1454
        %v1744 = vpop.f32.mrb[0].mxu0
        %v1745 = vadd.f32 0.0, %v1744
        %v1746 = vpop.f32.mrb[0].mxu0
        %v1747 = vadd.f32 0.0, %v1746
        %v1748 = vpop.f32.mrb[0].mxu0
        %v1749 = vadd.f32 0.0, %v1748
        %v1750 = vpop.f32.mrb[0].mxu0
        %v1751 = vadd.f32 0.0, %v1750
        %1752 = vmatprep.mubr.bf16.mxu0 %v1457
        %1753 = vmatmul.mubr.bf16.gmra.mrb[0].mxu0 %v1456
        %v1754 = vpop.f32.mrb[0].mxu0
        %v1755 = vadd.f32 0.0, %v1754
        %v1756 = vpop.f32.mrb[0].mxu0
        %v1757 = vadd.f32 0.0, %v1756
        %v1758 = vpop.f32.mrb[0].mxu0
        %v1759 = vadd.f32 0.0, %v1758
        %v1760 = vpop.f32.mrb[0].mxu0
        %v1761 = vadd.f32 0.0, %v1760
        %1762 = vdwg.mxu0
        %1763 = vst [vmem:[%s351] sm:$0xff] %v1685
        %1764 = vst [vmem:[%s351 + $0x8] sm:$0xff] %v1687
        %1765 = vst [vmem:[%s351 + $0x10] sm:$0xff] %v1689
        %1766 = vst [vmem:[%s351 + $0x18] sm:$0xff] %v1691
        %1767 = vst [vmem:[%s351 + $0x20] sm:$0xff] %v1695
        %1768 = vst [vmem:[%s351 + $0x28] sm:$0xff] %v1697
        %1769 = vst [vmem:[%s351 + $0x30] sm:$0xff] %v1699
        %1770 = vst [vmem:[%s351 + $0x38] sm:$0xff] %v1701
        %1771 = vst [vmem:[%s351 + $0x40] sm:$0xff] %v1705
        %1772 = vst [vmem:[%s351 + $0x48] sm:$0xff] %v1707
        %1773 = vst [vmem:[%s351 + $0x50] sm:$0xff] %v1709
        %1774 = vst [vmem:[%s351 + $0x58] sm:$0xff] %v1711
        %1775 = vst [vmem:[%s351 + $0x60] sm:$0xff] %v1715
        %1776 = vst [vmem:[%s351 + $0x68] sm:$0xff] %v1717
        %1777 = vst [vmem:[%s351 + $0x70] sm:$0xff] %v1719
        %1778 = vst [vmem:[%s351 + $0x78] sm:$0xff] %v1721
        %1779 = vst [vmem:[%s351 + $0x80] sm:$0xff] %v1725
        %1780 = vst [vmem:[%s351 + $0x88] sm:$0xff] %v1727
        %1781 = vst [vmem:[%s351 + $0x90] sm:$0xff] %v1729
        %1782 = vst [vmem:[%s351 + $0x98] sm:$0xff] %v1731
        %1783 = vst [vmem:[%s351 + $0xa0] sm:$0xff] %v1735
        %1784 = vst [vmem:[%s351 + $0xa8] sm:$0xff] %v1737
        %1785 = vst [vmem:[%s351 + $0xb0] sm:$0xff] %v1739
        %1786 = vst [vmem:[%s351 + $0xb8] sm:$0xff] %v1741
        %1787 = vst [vmem:[%s351 + $0xc0] sm:$0xff] %v1745
        %1788 = vst [vmem:[%s351 + $0xc8] sm:$0xff] %v1747
        %1789 = vst [vmem:[%s351 + $0xd0] sm:$0xff] %v1749
        %1790 = vst [vmem:[%s351 + $0xd8] sm:$0xff] %v1751
        %1791 = vst [vmem:[%s351 + $0xe0] sm:$0xff] %v1755
        %1792 = vst [vmem:[%s351 + $0xe8] sm:$0xff] %v1757
        %1793 = vst [vmem:[%s351 + $0xf0] sm:$0xff] %v1759
        %1794 = vst [vmem:[%s351 + $0xf8] sm:$0xff] %v1761
        %s1795 = sand.u32 %s169, 1
        %s1796 = scalar_lea.sflag [#allocation4], %s1795
        %s1797 = sand.u32 %s169, 1
        %s1798 = smul.addr %s1797, 256
        %s1799 = scalar_lea.vmem [#allocation11], %s1798
        // Predicated region
        $region65: #{tpu_custom_call.1} parent=43 // pred_check
          %p1800 = pneg %p179
        $region66: #{tpu_custom_call.1} parent=43 // pred_check_branch
          %1802 = sbr.rel (%p1800) target = $region68
        $region67: #{tpu_custom_call.1} parent=43 // pred_region
          %s1803 = smul.u32 16, %s25
          %s1805 = ssub.s32 4096, 4096
          %1806 = vsyncadd %s1796, %s1805
          %s1807 = smul.addr %s1803, 2
          %s1808 = smul.addr %s1807, 128
          %s1809 = scalar_lea.hbm %s6, %s1808
          %s1810 = sshll.u32 %s1799, 4
          %s1811 = int_to_ptr.vmem [resolvable:$true] %s1810
          %1816 = dma.vmem_to_hbm [thread:$0]  %s1811, 4096, %s1809, %s1796, 256, 256, 16
        $region68: #{tpu_custom_call.1} parent=43 // pred_fallthru
          _
      $region44: #{tpu_custom_call.1} parent=5 // pred_fallthru
        _
      %p1817 = scmp.le.s32.totalorder 2, %s20
      // Predicated region
      $region69: #{tpu_custom_call.1} parent=5 // pred_check
        %p1818 = pneg %p1817
      $region70: #{tpu_custom_call.1} parent=5 // pred_check_branch
        %1820 = sbr.rel (%p1818) target = $region72
      $region71: #{tpu_custom_call.1} parent=5 // pred_region
        %s1821 = ssub.s32 %s20, 2
        // Predicated region
        $region73: #{tpu_custom_call.1} parent=71 // pred_check
          %p1822 = pneg %p185
        $region74: #{tpu_custom_call.1} parent=71 // pred_check_branch
          %1824 = sbr.rel (%p1822) target = $region76
        $region75: #{tpu_custom_call.1} parent=71 // pred_region
          %s1825 = sand.u32 %s170, 1
          %s1826 = scalar_lea.sflag [#allocation4], %s1825
          %s1827 = sand.u32 %s170, 1
          %s1828 = smul.addr %s1827, 256
          %s1829 = scalar_lea.vmem [#allocation11], %s1828
          %1830 = dma.done %s1826, 4096
        $region76: #{tpu_custom_call.1} parent=71 // pred_fallthru
          _
      $region72: #{tpu_custom_call.1} parent=5 // pred_fallthru
        _
    $region6: #{tpu_custom_call.1} parent=1 // loop_footer
      %s24 = sadd.s32 1, %s20
    $region7: #{tpu_custom_call.1} parent=1 // loop_footer_branch
      %19 = sbr.rel target = $region3
    $region8: #{tpu_custom_call.1} parent=1 // loop_exit
      _
    %1831 = vsyncpa [#allocation3], 1
    %s1832 = scalar_lea.sflag [#allocation3], 1
    %1833 = vsyncpa %s1832, 1
    %1834 = vsyncpa [#allocation6], 1
    %1835 = vsyncpa [#allocation9], 1
    %1836 = vsyncpa [#allocation4], 1
    %s1837 = scalar_lea.sflag [#allocation4], 1
    %1838 = vsyncpa %s1837, 1

</llo_original>
